<compile_context>
chip_gen: v7x
topology: tpu7x:2x2x1
jax: 0.10.0
libtpu: 0.0.40
codegen_flags: <defaults>
</compile_context>

<pallas_src>
import jax
import jax.numpy as jnp
import numpy as np
from jax.experimental import pallas as pl
from jax.experimental.pallas import tpu as pltpu

# ----------------------------------------------------------------------------
# Module-consistent config
# ----------------------------------------------------------------------------
BATCH_SIZE = 2      # args.batch_size
FILTER_SIZE = 8     # args.filter_size
AUDIO_WIN = 16      # per-frame audio window (4 stride-2 convs -> 1)
PARAM_SPACE = 64    # args.parameter_space
IN_CH = 29          # DeepSpeech feature channels

LANES = 128         # packed-parameter buffer lane width

# layer indices into the packed parameter buffer
(C1, C2, C3, C4, FC1, FC2, FC3, G1, G2, G3, G4, G5, GFC, BASIS) = range(14)


def _leaky(x, slope):
    return jnp.where(x > 0.0, x, slope * x)


# ----------------------------------------------------------------------------
# One-time parameter packing (torch layouts -> single (rows, 128) f32 buffer)
# ----------------------------------------------------------------------------
def pack_params(p, filter_size):
    """Pack all weights/biases into one buffer.

    Returns (pack, offsets); offsets[j] = (row_offset, n_rows, n_cols) with the
    weight occupying pack[off:off+rows, :cols] and the bias (if any) stored in
    the single row right below it.  Every block's row offset is 8-aligned.
    """
    def cw2(wt):    # Conv2d weight (Cout, Cin, 3, 1) -> im2col (3*Cin, Cout)
        cout = wt.shape[0]
        return jnp.transpose(wt[:, :, :, 0], (2, 1, 0)).reshape(-1, cout)

    def lw(wt):     # Linear weight (out, in) -> (in, out)
        return wt.T

    def banded1d(wt, fsz):
        # Conv1d (Cout, Cin, 3), padding=1 over a length-fsz axis, expressed as a
        # single (fsz*Cin, fsz*Cout) block-banded matmul on a (B, fsz*Cin) row.
        cout, cin, ksz = wt.shape
        wb = jnp.zeros((fsz * cin, fsz * cout), jnp.float32)
        for f in range(fsz):
            for k in range(ksz):
                fi = f + k - 1                      # padding = 1
                if 0 <= fi < fsz:
                    wb = wb.at[fi * cin:(fi + 1) * cin,
                               f * cout:(f + 1) * cout].set(wt[:, :, k].T)
        return wb

    def banded_bias(bv, fsz):
        return jnp.tile(bv, fsz)                    # bias_big[f*Cout + co] = b[co]

    layers = [
        (cw2(p['c1_w']), p['c1_b']),
        (cw2(p['c2_w']), p['c2_b']),
        (cw2(p['c3_w']), p['c3_b']),
        (cw2(p['c4_w']), p['c4_b']),
        (lw(p['fc1_w']), p['fc1_b']),
        (lw(p['fc2_w']), p['fc2_b']),
        (lw(p['fc3_w']), p['fc3_b']),
        (banded1d(p['f1_w'], filter_size), banded_bias(p['f1_b'], filter_size)),
        (banded1d(p['f2_w'], filter_size), banded_bias(p['f2_b'], filter_size)),
        (banded1d(p['f3_w'], filter_size), banded_bias(p['f3_b'], filter_size)),
        (banded1d(p['f4_w'], filter_size), banded_bias(p['f4_b'], filter_size)),
        (banded1d(p['f5_w'], filter_size), banded_bias(p['f5_b'], filter_size)),
        (lw(p['fc_w']), p['fc_b']),
        (p['exp_basis'], None),
    ]

    blocks, offsets, off = [], [], 0
    for w, b in layers:
        rows, cols = w.shape
        assert cols <= LANES
        nrows = rows + (0 if b is None else 1)
        blk_rows = -(-nrows // 8) * 8               # 8-align each block
        blk = jnp.zeros((blk_rows, LANES), jnp.float32)
        blk = blk.at[:rows, :cols].set(w)
        if b is not None:
            blk = blk.at[rows, :cols].set(b)
        blocks.append(blk)
        offsets.append((off, rows, cols))
        off += blk_rows
    return jnp.concatenate(blocks, axis=0), tuple(offsets)


# ----------------------------------------------------------------------------
# Fused kernel: PerFrameExp + FilterWeight + softmax + weighted sum + basis
# ----------------------------------------------------------------------------
def make_audio2exp_kernel(offsets, bsz, fsz):
    def kernel(x_ref, p_ref, flame_ref, filt_ref):
        # x_ref : (H, N=F*B, 29) f32, spatial axis leading, rows ordered (f, b)
        # p_ref : packed parameter buffer (rows, 128) f32

        def getw(j):
            off, rows, cols = offsets[j]
            return p_ref[off:off + rows, 0:cols]

        def getb(j):
            off, rows, cols = offsets[j]
            return p_ref[off + rows:off + rows + 1, 0:cols]

        def dense(x, j, slope=None):
            y = jnp.dot(x, getw(j), preferred_element_type=jnp.float32) + getb(j)
            return y if slope is None else _leaky(y, slope)

        hh = x_ref.shape[0]
        n = x_ref.shape[1]                           # = fsz * bsz

        # ---------------- PerFrameExp: one im2col matmul per conv stage -------
        xs = [x_ref[h] for h in range(hh)]           # leading-axis slices: (n, Cin)

        def conv_stage(xs, j, slope, stride=2):
            cin = xs[0].shape[1]
            zero = jnp.zeros((n, cin), jnp.float32)
            xp = [zero] + xs + [zero]                # padding = 1
            lout = (len(xs) + 2 - 3) // stride + 1
            im_rows = [jnp.concatenate(xp[h * stride:h * stride + 3], axis=1)
                       for h in range(lout)]         # each (n, 3*Cin)
            big = im_rows[0] if lout == 1 else jnp.concatenate(im_rows, axis=0)
            y = _leaky(jnp.dot(big, getw(j), preferred_element_type=jnp.float32)
                       + getb(j), slope)             # (lout*n, Cout)
            return [y[h * n:(h + 1) * n, :] for h in range(lout)]

        xs = conv_stage(xs, C1, 0.02)                # 8 x (n, 32)   [128x87 @ 87x32]
        xs = conv_stage(xs, C2, 0.02)                # 4 x (n, 32)
        xs = conv_stage(xs, C3, 0.2)                 # 2 x (n, 64)
        xs = conv_stage(xs, C4, 0.2)                 # 1 x (n, 64)   (torch squeeze)
        h = xs[0]
        h = dense(h, FC1, 0.02)                      # (n, 128)
        h = dense(h, FC2, 0.02)                      # (n, 64)
        pf = jnp.tanh(dense(h, FC3))                 # (n, 32), rows ordered (f, b)

        # ---------------- rearrange to (B, F*32): lane-major filter layout ----
        c = pf.shape[1]
        pf_bf = jnp.concatenate([pf[f * bsz:(f + 1) * bsz, :] for f in range(fsz)],
                                axis=1)              # (B, F*32)

        # ---------------- FilterWeight: each Conv1d = one banded matmul -------
        a = dense(pf_bf, G1, 0.02)                   # (B, F*16)
        a = dense(a, G2, 0.02)                       # (B, F*8)
        a = dense(a, G3, 0.02)                       # (B, F*4)
        a = dense(a, G4, 0.02)                       # (B, F*2)
        a = dense(a, G5, 0.02)                       # (B, F)   == torch squeeze()
        logits = dense(a, GFC)                       # (B, F)

        m = jnp.max(logits, axis=1, keepdims=True)
        e = jnp.exp(logits - m)
        wgt = e * pl.reciprocal(jnp.sum(e, axis=1, keepdims=True))   # softmax (B, F)

        # ---------------- weighted temporal sum + expression basis ------------
        filt = wgt[:, 0:1] * pf_bf[:, 0:c]
        for f in range(1, fsz):
            filt = filt + wgt[:, f:f + 1] * pf_bf[:, f * c:(f + 1) * c]
        filt_ref[...] = filt                                         # (B, 32)
        flame_ref[...] = jnp.dot(filt, getw(BASIS),
                                 preferred_element_type=jnp.float32)  # (B, P)

    return kernel


# ----------------------------------------------------------------------------
# Wrapper
# ----------------------------------------------------------------------------
def audio2exp_pallas(ds, pack, offsets):
    """ds: (B, filter_size, 29, H) float32 (torch module input layout)."""
    bsz, fsz, cin, hh = ds.shape
    pspace = offsets[BASIS][2]
    # channels-last, spatial axis leading, rows ordered (f, b) so that rows
    # [f*B, (f+1)*B) of the per-frame output belong to filter position f.
    x = jnp.transpose(ds, (3, 1, 0, 2)).reshape(hh, fsz * bsz, cin)

    vmem = pl.BlockSpec(memory_space=pltpu.MemorySpace.VMEM)
    kernel = make_audio2exp_kernel(offsets, bsz, fsz)
    flame, filtered = pl.pallas_call(
        kernel,
        out_shape=(jax.ShapeDtypeStruct((bsz, pspace), jnp.float32),
                   jax.ShapeDtypeStruct((bsz, 32), jnp.float32)),
        in_specs=[vmem, vmem],
        out_specs=(vmem, vmem),
    )(x, pack)
    return flame, filtered


# ----------------------------------------------------------------------------
# Pure-JAX reference that mirrors the PyTorch module exactly (verification)
# ----------------------------------------------------------------------------
def audio2exp_reference(ds, p):
    bsz, fsz, cin, hh = ds.shape
    n = bsz * fsz
    x = ds.reshape(n, cin, hh)[:, :, :, None]            # NCHW, W=1

    def conv2d(v, wt, bv):
        y = jax.lax.conv_general_dilated(v, wt, (2, 1), [(1, 1), (0, 0)],
                                         dimension_numbers=('NCHW', 'OIHW', 'NCHW'))
        return y + bv[None, :, None, None]

    def conv1d(v, wt, bv):
        y = jax.lax.conv_general_dilated(v, wt, (1,), [(1, 1)],
                                         dimension_numbers=('NCH', 'OIH', 'NCH'))
        return y + bv[None, :, None]

    x = _leaky(conv2d(x, p['c1_w'], p['c1_b']), 0.02)
    x = _leaky(conv2d(x, p['c2_w'], p['c2_b']), 0.02)
    x = _leaky(conv2d(x, p['c3_w'], p['c3_b']), 0.2)
    x = _leaky(conv2d(x, p['c4_w'], p['c4_b']), 0.2)
    x = x[:, :, 0, 0]                                    # squeeze -> (N, 64)
    x = _leaky(x @ p['fc1_w'].T + p['fc1_b'], 0.02)
    x = _leaky(x @ p['fc2_w'].T + p['fc2_b'], 0.02)
    pf = jnp.tanh(x @ p['fc3_w'].T + p['fc3_b'])         # (N, 32)

    pf = pf.reshape(bsz, fsz, 32).transpose(0, 2, 1)     # (B, 32, F)
    y = _leaky(conv1d(pf, p['f1_w'], p['f1_b']), 0.02)
    y = _leaky(conv1d(y, p['f2_w'], p['f2_b']), 0.02)
    y = _leaky(conv1d(y, p['f3_w'], p['f3_b']), 0.02)
    y = _leaky(conv1d(y, p['f4_w'], p['f4_b']), 0.02)
    y = _leaky(conv1d(y, p['f5_w'], p['f5_b']), 0.02)
    y = y[:, 0, :]                                       # squeeze -> (B, F)
    y = y @ p['fc_w'].T + p['fc_b']
    w = jax.nn.softmax(y, axis=1)
    filtered = (pf * w[:, None, :]).sum(axis=2)          # (B, 32)
    flame = filtered @ p['exp_basis']                    # (B, P)
    return flame, filtered


# ----------------------------------------------------------------------------
# Deterministic synthetic parameters (torch layouts)
# ----------------------------------------------------------------------------
def init_params(key):
    ks = iter(jax.random.split(key, 32))

    def rnd(shape, fan_in):
        return jax.random.normal(next(ks), shape, jnp.float32) / jnp.sqrt(float(fan_in))

    p = {}
    p['c1_w'] = rnd((32, IN_CH, 3, 1), IN_CH * 3); p['c1_b'] = rnd((32,), 32)
    p['c2_w'] = rnd((32, 32, 3, 1), 32 * 3);       p['c2_b'] = rnd((32,), 32)
    p['c3_w'] = rnd((64, 32, 3, 1), 32 * 3);       p['c3_b'] = rnd((64,), 64)
    p['c4_w'] = rnd((64, 64, 3, 1), 64 * 3);       p['c4_b'] = rnd((64,), 64)
    p['fc1_w'] = rnd((128, 64), 64);   p['fc1_b'] = rnd((128,), 128)
    p['fc2_w'] = rnd((64, 128), 128);  p['fc2_b'] = rnd((64,), 64)
    p['fc3_w'] = rnd((32, 64), 64);    p['fc3_b'] = rnd((32,), 32)
    p['f1_w'] = rnd((16, 32, 3), 32 * 3); p['f1_b'] = rnd((16,), 16)
    p['f2_w'] = rnd((8, 16, 3), 16 * 3);  p['f2_b'] = rnd((8,), 8)
    p['f3_w'] = rnd((4, 8, 3), 8 * 3);    p['f3_b'] = rnd((4,), 4)
    p['f4_w'] = rnd((2, 4, 3), 4 * 3);    p['f4_b'] = rnd((2,), 2)
    p['f5_w'] = rnd((1, 2, 3), 2 * 3);    p['f5_b'] = rnd((1,), 1)
    p['fc_w'] = rnd((FILTER_SIZE, FILTER_SIZE), FILTER_SIZE)
    p['fc_b'] = rnd((FILTER_SIZE,), FILTER_SIZE)
    p['exp_basis'] = jax.random.normal(next(ks), (32, PARAM_SPACE), jnp.float32)
    return p


if __name__ == "__main__":
    key = jax.random.PRNGKey(0)
    pkey, dkey = jax.random.split(key)
    params = init_params(pkey)
    ds = jax.random.normal(dkey, (BATCH_SIZE, FILTER_SIZE, IN_CH, AUDIO_WIN),
                           jnp.float32)

    # one-time packing (layout conversion happens here, not per forward call)
    wpack, offsets = pack_params(params, FILTER_SIZE)

    fwd = jax.jit(lambda d, w: audio2exp_pallas(d, w, offsets))
    flame, filtered = jax.block_until_ready(fwd(ds, wpack))

    flame_ref, filtered_ref = audio2exp_reference(ds, params)

    assert flame.shape == (BATCH_SIZE, PARAM_SPACE)
    assert filtered.shape == (BATCH_SIZE, 32)
    np.testing.assert_allclose(np.asarray(flame), np.asarray(flame_ref),
                               rtol=2e-3, atol=2e-3)
    np.testing.assert_allclose(np.asarray(filtered), np.asarray(filtered_ref),
                               rtol=2e-3, atol=2e-3)
    print("KERNEL_OK")
</pallas_src>

<mosaic_0001>
module attributes {stable_mosaic.version = 11 : i64} {
  func.func @kernel(%arg0: memref<16x16x29xf32, #tpu.memory_space<vmem>>, %arg1: memref<1360x128xf32, #tpu.memory_space<vmem>>, %arg2: memref<2x64xf32, #tpu.memory_space<vmem>>, %arg3: memref<2x32xf32, #tpu.memory_space<vmem>>) attributes {dimension_semantics = [], scalar_prefetch = 0 : i64, scratch_operands = 0 : i64, tpu.core_type = #tpu.core_type<tc>} {
    %c0 = arith.constant 0 : index
    %c0_0 = arith.constant 0 : index
    %c0_1 = arith.constant 0 : index
    %0 = vector.load %arg0[%c0, %c0_0, %c0_1] : memref<16x16x29xf32, #tpu.memory_space<vmem>>, vector<1x16x29xf32>
    %1 = vector.shape_cast %0 : vector<1x16x29xf32> to vector<16x29xf32>
    %c1 = arith.constant 1 : index
    %c0_2 = arith.constant 0 : index
    %c0_3 = arith.constant 0 : index
    %2 = vector.load %arg0[%c1, %c0_2, %c0_3] : memref<16x16x29xf32, #tpu.memory_space<vmem>>, vector<1x16x29xf32>
    %3 = vector.shape_cast %2 : vector<1x16x29xf32> to vector<16x29xf32>
    %c2 = arith.constant 2 : index
    %c0_4 = arith.constant 0 : index
    %c0_5 = arith.constant 0 : index
    %4 = vector.load %arg0[%c2, %c0_4, %c0_5] : memref<16x16x29xf32, #tpu.memory_space<vmem>>, vector<1x16x29xf32>
    %5 = vector.shape_cast %4 : vector<1x16x29xf32> to vector<16x29xf32>
    %c3 = arith.constant 3 : index
    %c0_6 = arith.constant 0 : index
    %c0_7 = arith.constant 0 : index
    %6 = vector.load %arg0[%c3, %c0_6, %c0_7] : memref<16x16x29xf32, #tpu.memory_space<vmem>>, vector<1x16x29xf32>
    %7 = vector.shape_cast %6 : vector<1x16x29xf32> to vector<16x29xf32>
    %c4 = arith.constant 4 : index
    %c0_8 = arith.constant 0 : index
    %c0_9 = arith.constant 0 : index
    %8 = vector.load %arg0[%c4, %c0_8, %c0_9] : memref<16x16x29xf32, #tpu.memory_space<vmem>>, vector<1x16x29xf32>
    %9 = vector.shape_cast %8 : vector<1x16x29xf32> to vector<16x29xf32>
    %c5 = arith.constant 5 : index
    %c0_10 = arith.constant 0 : index
    %c0_11 = arith.constant 0 : index
    %10 = vector.load %arg0[%c5, %c0_10, %c0_11] : memref<16x16x29xf32, #tpu.memory_space<vmem>>, vector<1x16x29xf32>
    %11 = vector.shape_cast %10 : vector<1x16x29xf32> to vector<16x29xf32>
    %c6 = arith.constant 6 : index
    %c0_12 = arith.constant 0 : index
    %c0_13 = arith.constant 0 : index
    %12 = vector.load %arg0[%c6, %c0_12, %c0_13] : memref<16x16x29xf32, #tpu.memory_space<vmem>>, vector<1x16x29xf32>
    %13 = vector.shape_cast %12 : vector<1x16x29xf32> to vector<16x29xf32>
    %c7 = arith.constant 7 : index
    %c0_14 = arith.constant 0 : index
    %c0_15 = arith.constant 0 : index
    %14 = vector.load %arg0[%c7, %c0_14, %c0_15] : memref<16x16x29xf32, #tpu.memory_space<vmem>>, vector<1x16x29xf32>
    %15 = vector.shape_cast %14 : vector<1x16x29xf32> to vector<16x29xf32>
    %c8 = arith.constant 8 : index
    %c0_16 = arith.constant 0 : index
    %c0_17 = arith.constant 0 : index
    %16 = vector.load %arg0[%c8, %c0_16, %c0_17] : memref<16x16x29xf32, #tpu.memory_space<vmem>>, vector<1x16x29xf32>
    %17 = vector.shape_cast %16 : vector<1x16x29xf32> to vector<16x29xf32>
    %c9 = arith.constant 9 : index
    %c0_18 = arith.constant 0 : index
    %c0_19 = arith.constant 0 : index
    %18 = vector.load %arg0[%c9, %c0_18, %c0_19] : memref<16x16x29xf32, #tpu.memory_space<vmem>>, vector<1x16x29xf32>
    %19 = vector.shape_cast %18 : vector<1x16x29xf32> to vector<16x29xf32>
    %c10 = arith.constant 10 : index
    %c0_20 = arith.constant 0 : index
    %c0_21 = arith.constant 0 : index
    %20 = vector.load %arg0[%c10, %c0_20, %c0_21] : memref<16x16x29xf32, #tpu.memory_space<vmem>>, vector<1x16x29xf32>
    %21 = vector.shape_cast %20 : vector<1x16x29xf32> to vector<16x29xf32>
    %c11 = arith.constant 11 : index
    %c0_22 = arith.constant 0 : index
    %c0_23 = arith.constant 0 : index
    %22 = vector.load %arg0[%c11, %c0_22, %c0_23] : memref<16x16x29xf32, #tpu.memory_space<vmem>>, vector<1x16x29xf32>
    %23 = vector.shape_cast %22 : vector<1x16x29xf32> to vector<16x29xf32>
    %c12 = arith.constant 12 : index
    %c0_24 = arith.constant 0 : index
    %c0_25 = arith.constant 0 : index
    %24 = vector.load %arg0[%c12, %c0_24, %c0_25] : memref<16x16x29xf32, #tpu.memory_space<vmem>>, vector<1x16x29xf32>
    %25 = vector.shape_cast %24 : vector<1x16x29xf32> to vector<16x29xf32>
    %c13 = arith.constant 13 : index
    %c0_26 = arith.constant 0 : index
    %c0_27 = arith.constant 0 : index
    %26 = vector.load %arg0[%c13, %c0_26, %c0_27] : memref<16x16x29xf32, #tpu.memory_space<vmem>>, vector<1x16x29xf32>
    %27 = vector.shape_cast %26 : vector<1x16x29xf32> to vector<16x29xf32>
    %c14 = arith.constant 14 : index
    %c0_28 = arith.constant 0 : index
    %c0_29 = arith.constant 0 : index
    %28 = vector.load %arg0[%c14, %c0_28, %c0_29] : memref<16x16x29xf32, #tpu.memory_space<vmem>>, vector<1x16x29xf32>
    %29 = vector.shape_cast %28 : vector<1x16x29xf32> to vector<16x29xf32>
    %c15 = arith.constant 15 : index
    %c0_30 = arith.constant 0 : index
    %c0_31 = arith.constant 0 : index
    %30 = vector.load %arg0[%c15, %c0_30, %c0_31] : memref<16x16x29xf32, #tpu.memory_space<vmem>>, vector<1x16x29xf32>
    %31 = vector.shape_cast %30 : vector<1x16x29xf32> to vector<16x29xf32>
    %cst = arith.constant 0.000000e+00 : f32
    %32 = vector.broadcast %cst : f32 to vector<16x29xf32>
    %33 = tpu.concatenate %32, %1, %3 in 1 : vector<16x29xf32>, vector<16x29xf32>, vector<16x29xf32> -> vector<16x87xf32>
    %34 = tpu.concatenate %3, %5, %7 in 1 : vector<16x29xf32>, vector<16x29xf32>, vector<16x29xf32> -> vector<16x87xf32>
    %35 = tpu.concatenate %7, %9, %11 in 1 : vector<16x29xf32>, vector<16x29xf32>, vector<16x29xf32> -> vector<16x87xf32>
    %36 = tpu.concatenate %11, %13, %15 in 1 : vector<16x29xf32>, vector<16x29xf32>, vector<16x29xf32> -> vector<16x87xf32>
    %37 = tpu.concatenate %15, %17, %19 in 1 : vector<16x29xf32>, vector<16x29xf32>, vector<16x29xf32> -> vector<16x87xf32>
    %38 = tpu.concatenate %19, %21, %23 in 1 : vector<16x29xf32>, vector<16x29xf32>, vector<16x29xf32> -> vector<16x87xf32>
    %39 = tpu.concatenate %23, %25, %27 in 1 : vector<16x29xf32>, vector<16x29xf32>, vector<16x29xf32> -> vector<16x87xf32>
    %40 = tpu.concatenate %27, %29, %31 in 1 : vector<16x29xf32>, vector<16x29xf32>, vector<16x29xf32> -> vector<16x87xf32>
    %41 = tpu.concatenate %33, %34, %35, %36, %37, %38, %39, %40 in 0 : vector<16x87xf32>, vector<16x87xf32>, vector<16x87xf32>, vector<16x87xf32>, vector<16x87xf32>, vector<16x87xf32>, vector<16x87xf32>, vector<16x87xf32> -> vector<128x87xf32>
    %c0_32 = arith.constant 0 : index
    %c0_33 = arith.constant 0 : index
    %42 = vector.load %arg1[%c0_32, %c0_33] : memref<1360x128xf32, #tpu.memory_space<vmem>>, vector<87x32xf32>
    %cst_34 = arith.constant dense<0.000000e+00> : vector<128x32xf32>
    %43 = tpu.matmul %41, %42, %cst_34 {dimension_numbers = #tpu.dot_dimension_numbers<[1], [0], [0], [1], [0, 0, 1, 1], [], []>} : vector<128x87xf32>, vector<87x32xf32>, vector<128x32xf32> -> vector<128x32xf32>
    %c87 = arith.constant 87 : index
    %c0_35 = arith.constant 0 : index
    %44 = vector.load %arg1[%c87, %c0_35] : memref<1360x128xf32, #tpu.memory_space<vmem>>, vector<1x32xf32>
    %45 = vector.broadcast %44 : vector<1x32xf32> to vector<128x32xf32>
    %46 = arith.addf %43, %45 : vector<128x32xf32>
    %cst_36 = arith.constant 0.000000e+00 : f32
    %47 = vector.broadcast %cst_36 : f32 to vector<128x32xf32>
    %48 = arith.cmpf ogt, %46, %47 : vector<128x32xf32>
    %cst_37 = arith.constant 2.000000e-02 : f32
    %49 = vector.broadcast %cst_37 : f32 to vector<128x32xf32>
    %50 = arith.mulf %49, %46 : vector<128x32xf32>
    %51 = arith.select %48, %46, %50 : vector<128x32xi1>, vector<128x32xf32>
    %52 = vector.extract_strided_slice %51 {offsets = [0, 0], sizes = [16, 32], strides = [1, 1]} : vector<128x32xf32> to vector<16x32xf32>
    %53 = vector.extract_strided_slice %51 {offsets = [16, 0], sizes = [16, 32], strides = [1, 1]} : vector<128x32xf32> to vector<16x32xf32>
    %54 = vector.extract_strided_slice %51 {offsets = [32, 0], sizes = [16, 32], strides = [1, 1]} : vector<128x32xf32> to vector<16x32xf32>
    %55 = vector.extract_strided_slice %51 {offsets = [48, 0], sizes = [16, 32], strides = [1, 1]} : vector<128x32xf32> to vector<16x32xf32>
    %56 = vector.extract_strided_slice %51 {offsets = [64, 0], sizes = [16, 32], strides = [1, 1]} : vector<128x32xf32> to vector<16x32xf32>
    %57 = vector.extract_strided_slice %51 {offsets = [80, 0], sizes = [16, 32], strides = [1, 1]} : vector<128x32xf32> to vector<16x32xf32>
    %58 = vector.extract_strided_slice %51 {offsets = [96, 0], sizes = [16, 32], strides = [1, 1]} : vector<128x32xf32> to vector<16x32xf32>
    %59 = vector.extract_strided_slice %51 {offsets = [112, 0], sizes = [16, 32], strides = [1, 1]} : vector<128x32xf32> to vector<16x32xf32>
    %cst_38 = arith.constant 0.000000e+00 : f32
    %60 = vector.broadcast %cst_38 : f32 to vector<16x32xf32>
    %61 = tpu.concatenate %60, %52, %53 in 1 : vector<16x32xf32>, vector<16x32xf32>, vector<16x32xf32> -> vector<16x96xf32>
    %62 = tpu.concatenate %53, %54, %55 in 1 : vector<16x32xf32>, vector<16x32xf32>, vector<16x32xf32> -> vector<16x96xf32>
    %63 = tpu.concatenate %55, %56, %57 in 1 : vector<16x32xf32>, vector<16x32xf32>, vector<16x32xf32> -> vector<16x96xf32>
    %64 = tpu.concatenate %57, %58, %59 in 1 : vector<16x32xf32>, vector<16x32xf32>, vector<16x32xf32> -> vector<16x96xf32>
    %65 = tpu.concatenate %61, %62, %63, %64 in 0 : vector<16x96xf32>, vector<16x96xf32>, vector<16x96xf32>, vector<16x96xf32> -> vector<64x96xf32>
    %c88 = arith.constant 88 : index
    %c0_39 = arith.constant 0 : index
    %66 = vector.load %arg1[%c88, %c0_39] : memref<1360x128xf32, #tpu.memory_space<vmem>>, vector<96x32xf32>
    %cst_40 = arith.constant dense<0.000000e+00> : vector<64x32xf32>
    %67 = tpu.matmul %65, %66, %cst_40 {dimension_numbers = #tpu.dot_dimension_numbers<[1], [0], [0], [1], [0, 0, 1, 1], [], []>} : vector<64x96xf32>, vector<96x32xf32>, vector<64x32xf32> -> vector<64x32xf32>
    %c184 = arith.constant 184 : index
    %c0_41 = arith.constant 0 : index
    %68 = vector.load %arg1[%c184, %c0_41] : memref<1360x128xf32, #tpu.memory_space<vmem>>, vector<1x32xf32>
    %69 = vector.broadcast %68 : vector<1x32xf32> to vector<64x32xf32>
    %70 = arith.addf %67, %69 : vector<64x32xf32>
    %cst_42 = arith.constant 0.000000e+00 : f32
    %71 = vector.broadcast %cst_42 : f32 to vector<64x32xf32>
    %72 = arith.cmpf ogt, %70, %71 : vector<64x32xf32>
    %cst_43 = arith.constant 2.000000e-02 : f32
    %73 = vector.broadcast %cst_43 : f32 to vector<64x32xf32>
    %74 = arith.mulf %73, %70 : vector<64x32xf32>
    %75 = arith.select %72, %70, %74 : vector<64x32xi1>, vector<64x32xf32>
    %76 = vector.extract_strided_slice %75 {offsets = [0, 0], sizes = [16, 32], strides = [1, 1]} : vector<64x32xf32> to vector<16x32xf32>
    %77 = vector.extract_strided_slice %75 {offsets = [16, 0], sizes = [16, 32], strides = [1, 1]} : vector<64x32xf32> to vector<16x32xf32>
    %78 = vector.extract_strided_slice %75 {offsets = [32, 0], sizes = [16, 32], strides = [1, 1]} : vector<64x32xf32> to vector<16x32xf32>
    %79 = vector.extract_strided_slice %75 {offsets = [48, 0], sizes = [16, 32], strides = [1, 1]} : vector<64x32xf32> to vector<16x32xf32>
    %cst_44 = arith.constant 0.000000e+00 : f32
    %80 = vector.broadcast %cst_44 : f32 to vector<16x32xf32>
    %81 = tpu.concatenate %80, %76, %77 in 1 : vector<16x32xf32>, vector<16x32xf32>, vector<16x32xf32> -> vector<16x96xf32>
    %82 = tpu.concatenate %77, %78, %79 in 1 : vector<16x32xf32>, vector<16x32xf32>, vector<16x32xf32> -> vector<16x96xf32>
    %83 = tpu.concatenate %81, %82 in 0 : vector<16x96xf32>, vector<16x96xf32> -> vector<32x96xf32>
    %c192 = arith.constant 192 : index
    %c0_45 = arith.constant 0 : index
    %84 = vector.load %arg1[%c192, %c0_45] : memref<1360x128xf32, #tpu.memory_space<vmem>>, vector<96x64xf32>
    %cst_46 = arith.constant dense<0.000000e+00> : vector<32x64xf32>
    %85 = tpu.matmul %83, %84, %cst_46 {dimension_numbers = #tpu.dot_dimension_numbers<[1], [0], [0], [1], [0, 0, 1, 1], [], []>} : vector<32x96xf32>, vector<96x64xf32>, vector<32x64xf32> -> vector<32x64xf32>
    %c288 = arith.constant 288 : index
    %c0_47 = arith.constant 0 : index
    %86 = vector.load %arg1[%c288, %c0_47] : memref<1360x128xf32, #tpu.memory_space<vmem>>, vector<1x64xf32>
    %87 = vector.broadcast %86 : vector<1x64xf32> to vector<32x64xf32>
    %88 = arith.addf %85, %87 : vector<32x64xf32>
    %cst_48 = arith.constant 0.000000e+00 : f32
    %89 = vector.broadcast %cst_48 : f32 to vector<32x64xf32>
    %90 = arith.cmpf ogt, %88, %89 : vector<32x64xf32>
    %cst_49 = arith.constant 2.000000e-01 : f32
    %91 = vector.broadcast %cst_49 : f32 to vector<32x64xf32>
    %92 = arith.mulf %91, %88 : vector<32x64xf32>
    %93 = arith.select %90, %88, %92 : vector<32x64xi1>, vector<32x64xf32>
    %94 = vector.extract_strided_slice %93 {offsets = [0, 0], sizes = [16, 64], strides = [1, 1]} : vector<32x64xf32> to vector<16x64xf32>
    %95 = vector.extract_strided_slice %93 {offsets = [16, 0], sizes = [16, 64], strides = [1, 1]} : vector<32x64xf32> to vector<16x64xf32>
    %cst_50 = arith.constant 0.000000e+00 : f32
    %96 = vector.broadcast %cst_50 : f32 to vector<16x64xf32>
    %97 = tpu.concatenate %96, %94, %95 in 1 : vector<16x64xf32>, vector<16x64xf32>, vector<16x64xf32> -> vector<16x192xf32>
    %c296 = arith.constant 296 : index
    %c0_51 = arith.constant 0 : index
    %98 = vector.load %arg1[%c296, %c0_51] : memref<1360x128xf32, #tpu.memory_space<vmem>>, vector<192x64xf32>
    %cst_52 = arith.constant dense<0.000000e+00> : vector<16x64xf32>
    %99 = tpu.matmul %97, %98, %cst_52 {dimension_numbers = #tpu.dot_dimension_numbers<[1], [0], [0], [1], [0, 0, 1, 1], [], []>} : vector<16x192xf32>, vector<192x64xf32>, vector<16x64xf32> -> vector<16x64xf32>
    %c488 = arith.constant 488 : index
    %c0_53 = arith.constant 0 : index
    %100 = vector.load %arg1[%c488, %c0_53] : memref<1360x128xf32, #tpu.memory_space<vmem>>, vector<1x64xf32>
    %101 = vector.broadcast %100 : vector<1x64xf32> to vector<16x64xf32>
    %102 = arith.addf %99, %101 : vector<16x64xf32>
    %cst_54 = arith.constant 0.000000e+00 : f32
    %103 = vector.broadcast %cst_54 : f32 to vector<16x64xf32>
    %104 = arith.cmpf ogt, %102, %103 : vector<16x64xf32>
    %cst_55 = arith.constant 2.000000e-01 : f32
    %105 = vector.broadcast %cst_55 : f32 to vector<16x64xf32>
    %106 = arith.mulf %105, %102 : vector<16x64xf32>
    %107 = arith.select %104, %102, %106 : vector<16x64xi1>, vector<16x64xf32>
    %c496 = arith.constant 496 : index
    %c0_56 = arith.constant 0 : index
    %108 = vector.load %arg1[%c496, %c0_56] : memref<1360x128xf32, #tpu.memory_space<vmem>>, vector<64x128xf32>
    %cst_57 = arith.constant dense<0.000000e+00> : vector<16x128xf32>
    %109 = tpu.matmul %107, %108, %cst_57 {dimension_numbers = #tpu.dot_dimension_numbers<[1], [0], [0], [1], [0, 0, 1, 1], [], []>} : vector<16x64xf32>, vector<64x128xf32>, vector<16x128xf32> -> vector<16x128xf32>
    %c560 = arith.constant 560 : index
    %c0_58 = arith.constant 0 : index
    %110 = vector.load %arg1[%c560, %c0_58] : memref<1360x128xf32, #tpu.memory_space<vmem>>, vector<1x128xf32>
    %111 = vector.broadcast %110 : vector<1x128xf32> to vector<16x128xf32>
    %112 = arith.addf %109, %111 : vector<16x128xf32>
    %cst_59 = arith.constant 0.000000e+00 : f32
    %113 = vector.broadcast %cst_59 : f32 to vector<16x128xf32>
    %114 = arith.cmpf ogt, %112, %113 : vector<16x128xf32>
    %cst_60 = arith.constant 2.000000e-02 : f32
    %115 = vector.broadcast %cst_60 : f32 to vector<16x128xf32>
    %116 = arith.mulf %115, %112 : vector<16x128xf32>
    %117 = arith.select %114, %112, %116 : vector<16x128xi1>, vector<16x128xf32>
    %c568 = arith.constant 568 : index
    %c0_61 = arith.constant 0 : index
    %118 = vector.load %arg1[%c568, %c0_61] : memref<1360x128xf32, #tpu.memory_space<vmem>>, vector<128x64xf32>
    %cst_62 = arith.constant dense<0.000000e+00> : vector<16x64xf32>
    %119 = tpu.matmul %117, %118, %cst_62 {dimension_numbers = #tpu.dot_dimension_numbers<[1], [0], [0], [1], [0, 0, 1, 1], [], []>} : vector<16x128xf32>, vector<128x64xf32>, vector<16x64xf32> -> vector<16x64xf32>
    %c696 = arith.constant 696 : index
    %c0_63 = arith.constant 0 : index
    %120 = vector.load %arg1[%c696, %c0_63] : memref<1360x128xf32, #tpu.memory_space<vmem>>, vector<1x64xf32>
    %121 = vector.broadcast %120 : vector<1x64xf32> to vector<16x64xf32>
    %122 = arith.addf %119, %121 : vector<16x64xf32>
    %cst_64 = arith.constant 0.000000e+00 : f32
    %123 = vector.broadcast %cst_64 : f32 to vector<16x64xf32>
    %124 = arith.cmpf ogt, %122, %123 : vector<16x64xf32>
    %cst_65 = arith.constant 2.000000e-02 : f32
    %125 = vector.broadcast %cst_65 : f32 to vector<16x64xf32>
    %126 = arith.mulf %125, %122 : vector<16x64xf32>
    %127 = arith.select %124, %122, %126 : vector<16x64xi1>, vector<16x64xf32>
    %c704 = arith.constant 704 : index
    %c0_66 = arith.constant 0 : index
    %128 = vector.load %arg1[%c704, %c0_66] : memref<1360x128xf32, #tpu.memory_space<vmem>>, vector<64x32xf32>
    %cst_67 = arith.constant dense<0.000000e+00> : vector<16x32xf32>
    %129 = tpu.matmul %127, %128, %cst_67 {dimension_numbers = #tpu.dot_dimension_numbers<[1], [0], [0], [1], [0, 0, 1, 1], [], []>} : vector<16x64xf32>, vector<64x32xf32>, vector<16x32xf32> -> vector<16x32xf32>
    %c768 = arith.constant 768 : index
    %c0_68 = arith.constant 0 : index
    %130 = vector.load %arg1[%c768, %c0_68] : memref<1360x128xf32, #tpu.memory_space<vmem>>, vector<1x32xf32>
    %131 = vector.broadcast %130 : vector<1x32xf32> to vector<16x32xf32>
    %132 = arith.addf %129, %131 : vector<16x32xf32>
    %133 = math.tanh %132 : vector<16x32xf32>
    %134 = vector.extract_strided_slice %133 {offsets = [0, 0], sizes = [2, 32], strides = [1, 1]} : vector<16x32xf32> to vector<2x32xf32>
    %135 = vector.extract_strided_slice %133 {offsets = [2, 0], sizes = [2, 32], strides = [1, 1]} : vector<16x32xf32> to vector<2x32xf32>
    %136 = vector.extract_strided_slice %133 {offsets = [4, 0], sizes = [2, 32], strides = [1, 1]} : vector<16x32xf32> to vector<2x32xf32>
    %137 = vector.extract_strided_slice %133 {offsets = [6, 0], sizes = [2, 32], strides = [1, 1]} : vector<16x32xf32> to vector<2x32xf32>
    %138 = vector.extract_strided_slice %133 {offsets = [8, 0], sizes = [2, 32], strides = [1, 1]} : vector<16x32xf32> to vector<2x32xf32>
    %139 = vector.extract_strided_slice %133 {offsets = [10, 0], sizes = [2, 32], strides = [1, 1]} : vector<16x32xf32> to vector<2x32xf32>
    %140 = vector.extract_strided_slice %133 {offsets = [12, 0], sizes = [2, 32], strides = [1, 1]} : vector<16x32xf32> to vector<2x32xf32>
    %141 = vector.extract_strided_slice %133 {offsets = [14, 0], sizes = [2, 32], strides = [1, 1]} : vector<16x32xf32> to vector<2x32xf32>
    %142 = tpu.concatenate %134, %135, %136, %137, %138, %139, %140, %141 in 1 : vector<2x32xf32>, vector<2x32xf32>, vector<2x32xf32>, vector<2x32xf32>, vector<2x32xf32>, vector<2x32xf32>, vector<2x32xf32>, vector<2x32xf32> -> vector<2x256xf32>
    %c776 = arith.constant 776 : index
    %c0_69 = arith.constant 0 : index
    %143 = vector.load %arg1[%c776, %c0_69] : memref<1360x128xf32, #tpu.memory_space<vmem>>, vector<256x128xf32>
    %cst_70 = arith.constant dense<0.000000e+00> : vector<2x128xf32>
    %144 = tpu.matmul %142, %143, %cst_70 {dimension_numbers = #tpu.dot_dimension_numbers<[1], [0], [0], [1], [0, 0, 1, 1], [], []>} : vector<2x256xf32>, vector<256x128xf32>, vector<2x128xf32> -> vector<2x128xf32>
    %c1032 = arith.constant 1032 : index
    %c0_71 = arith.constant 0 : index
    %145 = vector.load %arg1[%c1032, %c0_71] : memref<1360x128xf32, #tpu.memory_space<vmem>>, vector<1x128xf32>
    %146 = vector.broadcast %145 : vector<1x128xf32> to vector<2x128xf32>
    %147 = arith.addf %144, %146 : vector<2x128xf32>
    %cst_72 = arith.constant 0.000000e+00 : f32
    %148 = vector.broadcast %cst_72 : f32 to vector<2x128xf32>
    %149 = arith.cmpf ogt, %147, %148 : vector<2x128xf32>
    %cst_73 = arith.constant 2.000000e-02 : f32
    %150 = vector.broadcast %cst_73 : f32 to vector<2x128xf32>
    %151 = arith.mulf %150, %147 : vector<2x128xf32>
    %152 = arith.select %149, %147, %151 : vector<2x128xi1>, vector<2x128xf32>
    %c1040 = arith.constant 1040 : index
    %c0_74 = arith.constant 0 : index
    %153 = vector.load %arg1[%c1040, %c0_74] : memref<1360x128xf32, #tpu.memory_space<vmem>>, vector<128x64xf32>
    %cst_75 = arith.constant dense<0.000000e+00> : vector<2x64xf32>
    %154 = tpu.matmul %152, %153, %cst_75 {dimension_numbers = #tpu.dot_dimension_numbers<[1], [0], [0], [1], [0, 0, 1, 1], [], []>} : vector<2x128xf32>, vector<128x64xf32>, vector<2x64xf32> -> vector<2x64xf32>
    %c1168 = arith.constant 1168 : index
    %c0_76 = arith.constant 0 : index
    %155 = vector.load %arg1[%c1168, %c0_76] : memref<1360x128xf32, #tpu.memory_space<vmem>>, vector<1x64xf32>
    %156 = vector.broadcast %155 : vector<1x64xf32> to vector<2x64xf32>
    %157 = arith.addf %154, %156 : vector<2x64xf32>
    %cst_77 = arith.constant 0.000000e+00 : f32
    %158 = vector.broadcast %cst_77 : f32 to vector<2x64xf32>
    %159 = arith.cmpf ogt, %157, %158 : vector<2x64xf32>
    %cst_78 = arith.constant 2.000000e-02 : f32
    %160 = vector.broadcast %cst_78 : f32 to vector<2x64xf32>
    %161 = arith.mulf %160, %157 : vector<2x64xf32>
    %162 = arith.select %159, %157, %161 : vector<2x64xi1>, vector<2x64xf32>
    %c1176 = arith.constant 1176 : index
    %c0_79 = arith.constant 0 : index
    %163 = vector.load %arg1[%c1176, %c0_79] : memref<1360x128xf32, #tpu.memory_space<vmem>>, vector<64x32xf32>
    %cst_80 = arith.constant dense<0.000000e+00> : vector<2x32xf32>
    %164 = tpu.matmul %162, %163, %cst_80 {dimension_numbers = #tpu.dot_dimension_numbers<[1], [0], [0], [1], [0, 0, 1, 1], [], []>} : vector<2x64xf32>, vector<64x32xf32>, vector<2x32xf32> -> vector<2x32xf32>
    %c1240 = arith.constant 1240 : index
    %c0_81 = arith.constant 0 : index
    %165 = vector.load %arg1[%c1240, %c0_81] : memref<1360x128xf32, #tpu.memory_space<vmem>>, vector<1x32xf32>
    %166 = vector.broadcast %165 : vector<1x32xf32> to vector<2x32xf32>
    %167 = arith.addf %164, %166 : vector<2x32xf32>
    %cst_82 = arith.constant 0.000000e+00 : f32
    %168 = vector.broadcast %cst_82 : f32 to vector<2x32xf32>
    %169 = arith.cmpf ogt, %167, %168 : vector<2x32xf32>
    %cst_83 = arith.constant 2.000000e-02 : f32
    %170 = vector.broadcast %cst_83 : f32 to vector<2x32xf32>
    %171 = arith.mulf %170, %167 : vector<2x32xf32>
    %172 = arith.select %169, %167, %171 : vector<2x32xi1>, vector<2x32xf32>
    %c1248 = arith.constant 1248 : index
    %c0_84 = arith.constant 0 : index
    %173 = vector.load %arg1[%c1248, %c0_84] : memref<1360x128xf32, #tpu.memory_space<vmem>>, vector<32x16xf32>
    %cst_85 = arith.constant dense<0.000000e+00> : vector<2x16xf32>
    %174 = tpu.matmul %172, %173, %cst_85 {dimension_numbers = #tpu.dot_dimension_numbers<[1], [0], [0], [1], [0, 0, 1, 1], [], []>} : vector<2x32xf32>, vector<32x16xf32>, vector<2x16xf32> -> vector<2x16xf32>
    %c1280 = arith.constant 1280 : index
    %c0_86 = arith.constant 0 : index
    %175 = vector.load %arg1[%c1280, %c0_86] : memref<1360x128xf32, #tpu.memory_space<vmem>>, vector<1x16xf32>
    %176 = vector.broadcast %175 : vector<1x16xf32> to vector<2x16xf32>
    %177 = arith.addf %174, %176 : vector<2x16xf32>
    %cst_87 = arith.constant 0.000000e+00 : f32
    %178 = vector.broadcast %cst_87 : f32 to vector<2x16xf32>
    %179 = arith.cmpf ogt, %177, %178 : vector<2x16xf32>
    %cst_88 = arith.constant 2.000000e-02 : f32
    %180 = vector.broadcast %cst_88 : f32 to vector<2x16xf32>
    %181 = arith.mulf %180, %177 : vector<2x16xf32>
    %182 = arith.select %179, %177, %181 : vector<2x16xi1>, vector<2x16xf32>
    %c1288 = arith.constant 1288 : index
    %c0_89 = arith.constant 0 : index
    %183 = vector.load %arg1[%c1288, %c0_89] : memref<1360x128xf32, #tpu.memory_space<vmem>>, vector<16x8xf32>
    %cst_90 = arith.constant dense<0.000000e+00> : vector<2x8xf32>
    %184 = tpu.matmul %182, %183, %cst_90 {dimension_numbers = #tpu.dot_dimension_numbers<[1], [0], [0], [1], [0, 0, 1, 1], [], []>} : vector<2x16xf32>, vector<16x8xf32>, vector<2x8xf32> -> vector<2x8xf32>
    %c1304 = arith.constant 1304 : index
    %c0_91 = arith.constant 0 : index
    %185 = vector.load %arg1[%c1304, %c0_91] : memref<1360x128xf32, #tpu.memory_space<vmem>>, vector<1x8xf32>
    %186 = vector.broadcast %185 : vector<1x8xf32> to vector<2x8xf32>
    %187 = arith.addf %184, %186 : vector<2x8xf32>
    %cst_92 = arith.constant 0.000000e+00 : f32
    %188 = vector.broadcast %cst_92 : f32 to vector<2x8xf32>
    %189 = arith.cmpf ogt, %187, %188 : vector<2x8xf32>
    %cst_93 = arith.constant 2.000000e-02 : f32
    %190 = vector.broadcast %cst_93 : f32 to vector<2x8xf32>
    %191 = arith.mulf %190, %187 : vector<2x8xf32>
    %192 = arith.select %189, %187, %191 : vector<2x8xi1>, vector<2x8xf32>
    %c1312 = arith.constant 1312 : index
    %c0_94 = arith.constant 0 : index
    %193 = vector.load %arg1[%c1312, %c0_94] : memref<1360x128xf32, #tpu.memory_space<vmem>>, vector<8x8xf32>
    %cst_95 = arith.constant dense<0.000000e+00> : vector<2x8xf32>
    %194 = tpu.matmul %192, %193, %cst_95 {dimension_numbers = #tpu.dot_dimension_numbers<[1], [0], [0], [1], [0, 0, 1, 1], [], []>} : vector<2x8xf32>, vector<8x8xf32>, vector<2x8xf32> -> vector<2x8xf32>
    %c1320 = arith.constant 1320 : index
    %c0_96 = arith.constant 0 : index
    %195 = vector.load %arg1[%c1320, %c0_96] : memref<1360x128xf32, #tpu.memory_space<vmem>>, vector<1x8xf32>
    %196 = vector.broadcast %195 : vector<1x8xf32> to vector<2x8xf32>
    %197 = arith.addf %194, %196 : vector<2x8xf32>
    %cst_97 = arith.constant dense<0xFF800000> : vector<2xf32>
    %198 = vector.multi_reduction <maximumf>, %197, %cst_97 [1] : vector<2x8xf32> to vector<2xf32>
    %199 = vector.shape_cast %198 : vector<2xf32> to vector<2x1xf32>
    %200 = vector.broadcast %199 : vector<2x1xf32> to vector<2x8xf32>
    %201 = arith.subf %197, %200 : vector<2x8xf32>
    %202 = math.exp %201 : vector<2x8xf32>
    %cst_98 = arith.constant dense<0.000000e+00> : vector<2xf32>
    %203 = vector.multi_reduction <add>, %202, %cst_98 [1] : vector<2x8xf32> to vector<2xf32>
    %204 = vector.shape_cast %203 : vector<2xf32> to vector<2x1xf32>
    %205 = tpu.reciprocal %204 : vector<2x1xf32> -> vector<2x1xf32>
    %206 = vector.broadcast %205 : vector<2x1xf32> to vector<2x8xf32>
    %207 = arith.mulf %202, %206 : vector<2x8xf32>
    %208 = vector.extract_strided_slice %207 {offsets = [0, 0], sizes = [2, 1], strides = [1, 1]} : vector<2x8xf32> to vector<2x1xf32>
    %209 = vector.extract_strided_slice %142 {offsets = [0, 0], sizes = [2, 32], strides = [1, 1]} : vector<2x256xf32> to vector<2x32xf32>
    %210 = vector.broadcast %208 : vector<2x1xf32> to vector<2x32xf32>
    %211 = arith.mulf %210, %209 : vector<2x32xf32>
    %212 = vector.extract_strided_slice %207 {offsets = [0, 1], sizes = [2, 1], strides = [1, 1]} : vector<2x8xf32> to vector<2x1xf32>
    %213 = vector.extract_strided_slice %142 {offsets = [0, 32], sizes = [2, 32], strides = [1, 1]} : vector<2x256xf32> to vector<2x32xf32>
    %214 = vector.broadcast %212 : vector<2x1xf32> to vector<2x32xf32>
    %215 = arith.mulf %214, %213 : vector<2x32xf32>
    %216 = arith.addf %211, %215 : vector<2x32xf32>
    %217 = vector.extract_strided_slice %207 {offsets = [0, 2], sizes = [2, 1], strides = [1, 1]} : vector<2x8xf32> to vector<2x1xf32>
    %218 = vector.extract_strided_slice %142 {offsets = [0, 64], sizes = [2, 32], strides = [1, 1]} : vector<2x256xf32> to vector<2x32xf32>
    %219 = vector.broadcast %217 : vector<2x1xf32> to vector<2x32xf32>
    %220 = arith.mulf %219, %218 : vector<2x32xf32>
    %221 = arith.addf %216, %220 : vector<2x32xf32>
    %222 = vector.extract_strided_slice %207 {offsets = [0, 3], sizes = [2, 1], strides = [1, 1]} : vector<2x8xf32> to vector<2x1xf32>
    %223 = vector.extract_strided_slice %142 {offsets = [0, 96], sizes = [2, 32], strides = [1, 1]} : vector<2x256xf32> to vector<2x32xf32>
    %224 = vector.broadcast %222 : vector<2x1xf32> to vector<2x32xf32>
    %225 = arith.mulf %224, %223 : vector<2x32xf32>
    %226 = arith.addf %221, %225 : vector<2x32xf32>
    %227 = vector.extract_strided_slice %207 {offsets = [0, 4], sizes = [2, 1], strides = [1, 1]} : vector<2x8xf32> to vector<2x1xf32>
    %228 = vector.extract_strided_slice %142 {offsets = [0, 128], sizes = [2, 32], strides = [1, 1]} : vector<2x256xf32> to vector<2x32xf32>
    %229 = vector.broadcast %227 : vector<2x1xf32> to vector<2x32xf32>
    %230 = arith.mulf %229, %228 : vector<2x32xf32>
    %231 = arith.addf %226, %230 : vector<2x32xf32>
    %232 = vector.extract_strided_slice %207 {offsets = [0, 5], sizes = [2, 1], strides = [1, 1]} : vector<2x8xf32> to vector<2x1xf32>
    %233 = vector.extract_strided_slice %142 {offsets = [0, 160], sizes = [2, 32], strides = [1, 1]} : vector<2x256xf32> to vector<2x32xf32>
    %234 = vector.broadcast %232 : vector<2x1xf32> to vector<2x32xf32>
    %235 = arith.mulf %234, %233 : vector<2x32xf32>
    %236 = arith.addf %231, %235 : vector<2x32xf32>
    %237 = vector.extract_strided_slice %207 {offsets = [0, 6], sizes = [2, 1], strides = [1, 1]} : vector<2x8xf32> to vector<2x1xf32>
    %238 = vector.extract_strided_slice %142 {offsets = [0, 192], sizes = [2, 32], strides = [1, 1]} : vector<2x256xf32> to vector<2x32xf32>
    %239 = vector.broadcast %237 : vector<2x1xf32> to vector<2x32xf32>
    %240 = arith.mulf %239, %238 : vector<2x32xf32>
    %241 = arith.addf %236, %240 : vector<2x32xf32>
    %242 = vector.extract_strided_slice %207 {offsets = [0, 7], sizes = [2, 1], strides = [1, 1]} : vector<2x8xf32> to vector<2x1xf32>
    %243 = vector.extract_strided_slice %142 {offsets = [0, 224], sizes = [2, 32], strides = [1, 1]} : vector<2x256xf32> to vector<2x32xf32>
    %244 = vector.broadcast %242 : vector<2x1xf32> to vector<2x32xf32>
    %245 = arith.mulf %244, %243 : vector<2x32xf32>
    %246 = arith.addf %241, %245 : vector<2x32xf32>
    %c0_99 = arith.constant 0 : index
    %c0_100 = arith.constant 0 : index
    %247 = vector.load %arg3[%c0_99, %c0_100] : memref<2x32xf32, #tpu.memory_space<vmem>>, vector<2x32xf32>
    tpu.vector_store %arg3[%c0_99, %c0_100], %246 {strides = array<i32>} : memref<2x32xf32, #tpu.memory_space<vmem>>, vector<2x32xf32>,
    %c1328 = arith.constant 1328 : index
    %c0_101 = arith.constant 0 : index
    %248 = vector.load %arg1[%c1328, %c0_101] : memref<1360x128xf32, #tpu.memory_space<vmem>>, vector<32x64xf32>
    %cst_102 = arith.constant dense<0.000000e+00> : vector<2x64xf32>
    %249 = tpu.matmul %246, %248, %cst_102 {dimension_numbers = #tpu.dot_dimension_numbers<[1], [0], [0], [1], [0, 0, 1, 1], [], []>} : vector<2x32xf32>, vector<32x64xf32>, vector<2x64xf32> -> vector<2x64xf32>
    %c0_103 = arith.constant 0 : index
    %c0_104 = arith.constant 0 : index
    %250 = vector.load %arg2[%c0_103, %c0_104] : memref<2x64xf32, #tpu.memory_space<vmem>>, vector<2x64xf32>
    tpu.vector_store %arg2[%c0_103, %c0_104], %249 {strides = array<i32>} : memref<2x64xf32, #tpu.memory_space<vmem>>, vector<2x64xf32>,
    return
  }
}

</mosaic_0001>

<llo_original>
// kernel: _lambda_.1
$region0: #{_lambda_.1}
  #allocation0 [shape = 'u32[]', space=smem, size = 0x4, offset = 0x4, fixed_abs, tag = 'smem constant byte address 0x4 - core index']
  #allocation1 [shape = 'u32[144,128]{1,0:T(1,128)}', space=vmem, size = 0x12000, scoped, tag = 'internal scratch']
  %s0 = inlined_call_operand.vmem [shape: f32[16,16,29], index: 0, kind: input, shape index: {}]
  %s1 = inlined_call_operand.hbm [shape: f32[1360,128], index: 1, kind: input, shape index: {}]
  %s2 = inlined_call_operand.hbm [shape: f32[2,64], index: 2, kind: output, shape index: {0}]
  %s3 = inlined_call_operand.hbm [shape: f32[2,32], index: 3, kind: output, shape index: {1}]
  %4 = xla_tuple %s2, %s3
  %s5 = sld [smem:[#allocation0]]
  $region30: #{_lambda_.1} parent=0
    _
  %s7 = ssub.s32 1, %s5
  %s8 = scalar_select 0, %s7, %s5
  $region1: #{_lambda_.1} parent=0
    #allocation2 [shape = 'u8[696320]{0}', space=vmem, size = 0xaa000, scoped, tag = 'input window, operand 1, single buffered']
    #allocation3 [shape = 's32[1]{0}', space=sflag, size = 0x4, scoped, tag = 'scoped memory for _lambda_.1']
    #allocation4 [shape = 's32[1]{0}', space=sflag, size = 0x4, scoped, tag = 'scoped memory for _lambda_.1']
    #allocation5 [shape = 'u8[1024]{0}', space=vmem, size = 0x400, scoped, tag = 'output window, operand 0, single buffered']
    #allocation6 [shape = 'u8[1024]{0}', space=vmem, size = 0x400, scoped, tag = 'output window, operand 1, single buffered']
    #allocation7 [shape = 's32[1]{0}', space=sflag, size = 0x4, scoped, tag = 'scoped memory for _lambda_.1']
    %9 = vsyncpa [#allocation3], 0
    %10 = vsyncpa [#allocation4], 0
    %11 = vsyncpa [#allocation7], 0
    // Predicated region
    $region2: #{_lambda_.1} parent=1 // pred_check
      _
    $region3: #{_lambda_.1} parent=1 // pred_check_branch
      %13 = sbr.rel (0) target = $region5
    $region4: #{_lambda_.1} parent=1 // pred_region
      _
    $region5: #{_lambda_.1} parent=1 // pred_fallthru
      _
    // Predicated region
    $region6: #{_lambda_.1} parent=1 // pred_check
      _
    $region7: #{_lambda_.1} parent=1 // pred_check_branch
      %15 = sbr.rel (0) target = $region9
    $region8: #{_lambda_.1} parent=1 // pred_region
      %s17 = ssub.s32 21760, 21760
      %18 = vsyncadd [#allocation3], %s17
      %s19 = sshll.u32 [#allocation2], 4
      %s20 = int_to_ptr.vmem [resolvable:$true] %s19
      %25 = dma.hbm_to_vmem [thread:$0]  %s1, 21760, %s20, [#allocation3], 128, 128, 8
    $region9: #{_lambda_.1} parent=1 // pred_fallthru
      _
    // Predicated region
    $region10: #{_lambda_.1} parent=1 // pred_check
      _
    $region11: #{_lambda_.1} parent=1 // pred_check_branch
      %27 = sbr.rel (0) target = $region13
    $region12: #{_lambda_.1} parent=1 // pred_region
      %28 = dma.done [#allocation3], 21760
    $region13: #{_lambda_.1} parent=1 // pred_fallthru
      _
    %v29 = vld [vmem:[%s0] sm:$0xff]
    %v30 = vld [vmem:[%s0 + $0x8] sm:$0xff]
    %s31 = scalar_lea.vmem %s0, 16
    %v32 = vld [vmem:[%s31] sm:$0xff]
    %v33 = vld [vmem:[%s31 + $0x8] sm:$0xff]
    %s34 = scalar_lea.vmem %s0, 32
    %v35 = vld [vmem:[%s34] sm:$0xff]
    %v36 = vld [vmem:[%s34 + $0x8] sm:$0xff]
    %s37 = scalar_lea.vmem %s0, 48
    %v38 = vld [vmem:[%s37] sm:$0xff]
    %v39 = vld [vmem:[%s37 + $0x8] sm:$0xff]
    %s40 = scalar_lea.vmem %s0, 64
    %v41 = vld [vmem:[%s40] sm:$0xff]
    %v42 = vld [vmem:[%s40 + $0x8] sm:$0xff]
    %s43 = scalar_lea.vmem %s0, 80
    %v44 = vld [vmem:[%s43] sm:$0xff]
    %v45 = vld [vmem:[%s43 + $0x8] sm:$0xff]
    %s46 = scalar_lea.vmem %s0, 96
    %v47 = vld [vmem:[%s46] sm:$0xff]
    %v48 = vld [vmem:[%s46 + $0x8] sm:$0xff]
    %s49 = scalar_lea.vmem %s0, 112
    %v50 = vld [vmem:[%s49] sm:$0xff]
    %v51 = vld [vmem:[%s49 + $0x8] sm:$0xff]
    %s52 = scalar_lea.vmem %s0, 128
    %v53 = vld [vmem:[%s52] sm:$0xff]
    %v54 = vld [vmem:[%s52 + $0x8] sm:$0xff]
    %s55 = scalar_lea.vmem %s0, 144
    %v56 = vld [vmem:[%s55] sm:$0xff]
    %v57 = vld [vmem:[%s55 + $0x8] sm:$0xff]
    %s58 = scalar_lea.vmem %s0, 160
    %v59 = vld [vmem:[%s58] sm:$0xff]
    %v60 = vld [vmem:[%s58 + $0x8] sm:$0xff]
    %s61 = scalar_lea.vmem %s0, 176
    %v62 = vld [vmem:[%s61] sm:$0xff]
    %v63 = vld [vmem:[%s61 + $0x8] sm:$0xff]
    %s64 = scalar_lea.vmem %s0, 192
    %v65 = vld [vmem:[%s64] sm:$0xff]
    %v66 = vld [vmem:[%s64 + $0x8] sm:$0xff]
    %s67 = scalar_lea.vmem %s0, 208
    %v68 = vld [vmem:[%s67] sm:$0xff]
    %v69 = vld [vmem:[%s67 + $0x8] sm:$0xff]
    %s70 = scalar_lea.vmem %s0, 224
    %v71 = vld [vmem:[%s70] sm:$0xff]
    %v72 = vld [vmem:[%s70 + $0x8] sm:$0xff]
    %s73 = scalar_lea.vmem %s0, 240
    %v74 = vld [vmem:[%s73] sm:$0xff]
    %v75 = vld [vmem:[%s73 + $0x8] sm:$0xff]
    %78 = vrot.lane.b32.xlu0 %v29, 29
    %v79 = vpop.permute.xlu0 %78
    %80 = vrot.lane.b32.xlu0 %v30, 29
    %v81 = vpop.permute.xlu0 %80
    %86 = vrot.lane.b32.xlu0 %v32, 58
    %v87 = vpop.permute.xlu0 %86
    %88 = vrot.lane.b32.xlu0 %v33, 58
    %v89 = vpop.permute.xlu0 %88
    %vm92 = vcmask 236544
    %v93 = vsel %vm92, 0.0, %v79
    %v94 = vsel %vm92, 0.0, %v81
    %vm95 = vcmask 474112
    %v96 = vsel %vm95, %v93, %v87
    %v97 = vsel %vm95, %v94, %v89
    %100 = vrot.lane.b32.xlu0 %v35, 29
    %v101 = vpop.permute.xlu0 %100
    %102 = vrot.lane.b32.xlu0 %v36, 29
    %v103 = vpop.permute.xlu0 %102
    %108 = vrot.lane.b32.xlu0 %v38, 58
    %v109 = vpop.permute.xlu0 %108
    %110 = vrot.lane.b32.xlu0 %v39, 58
    %v111 = vpop.permute.xlu0 %110
    %v114 = vsel %vm92, %v32, %v101
    %v115 = vsel %vm92, %v33, %v103
    %v116 = vsel %vm95, %v114, %v109
    %v117 = vsel %vm95, %v115, %v111
    %120 = vrot.lane.b32.xlu0 %v41, 29
    %v121 = vpop.permute.xlu0 %120
    %122 = vrot.lane.b32.xlu0 %v42, 29
    %v123 = vpop.permute.xlu0 %122
    %128 = vrot.lane.b32.xlu0 %v44, 58
    %v129 = vpop.permute.xlu0 %128
    %130 = vrot.lane.b32.xlu0 %v45, 58
    %v131 = vpop.permute.xlu0 %130
    %v134 = vsel %vm92, %v38, %v121
    %v135 = vsel %vm92, %v39, %v123
    %v136 = vsel %vm95, %v134, %v129
    %v137 = vsel %vm95, %v135, %v131
    %140 = vrot.lane.b32.xlu0 %v47, 29
    %v141 = vpop.permute.xlu0 %140
    %142 = vrot.lane.b32.xlu0 %v48, 29
    %v143 = vpop.permute.xlu0 %142
    %148 = vrot.lane.b32.xlu0 %v50, 58
    %v149 = vpop.permute.xlu0 %148
    %150 = vrot.lane.b32.xlu0 %v51, 58
    %v151 = vpop.permute.xlu0 %150
    %v154 = vsel %vm92, %v44, %v141
    %v155 = vsel %vm92, %v45, %v143
    %v156 = vsel %vm95, %v154, %v149
    %v157 = vsel %vm95, %v155, %v151
    %160 = vrot.lane.b32.xlu0 %v53, 29
    %v161 = vpop.permute.xlu0 %160
    %162 = vrot.lane.b32.xlu0 %v54, 29
    %v163 = vpop.permute.xlu0 %162
    %168 = vrot.lane.b32.xlu0 %v56, 58
    %v169 = vpop.permute.xlu0 %168
    %170 = vrot.lane.b32.xlu0 %v57, 58
    %v171 = vpop.permute.xlu0 %170
    %v174 = vsel %vm92, %v50, %v161
    %v175 = vsel %vm92, %v51, %v163
    %v176 = vsel %vm95, %v174, %v169
    %v177 = vsel %vm95, %v175, %v171
    %180 = vrot.lane.b32.xlu0 %v59, 29
    %v181 = vpop.permute.xlu0 %180
    %182 = vrot.lane.b32.xlu0 %v60, 29
    %v183 = vpop.permute.xlu0 %182
    %188 = vrot.lane.b32.xlu0 %v62, 58
    %v189 = vpop.permute.xlu0 %188
    %190 = vrot.lane.b32.xlu0 %v63, 58
    %v191 = vpop.permute.xlu0 %190
    %v194 = vsel %vm92, %v56, %v181
    %v195 = vsel %vm92, %v57, %v183
    %v196 = vsel %vm95, %v194, %v189
    %v197 = vsel %vm95, %v195, %v191
    %200 = vrot.lane.b32.xlu0 %v65, 29
    %v201 = vpop.permute.xlu0 %200
    %202 = vrot.lane.b32.xlu0 %v66, 29
    %v203 = vpop.permute.xlu0 %202
    %208 = vrot.lane.b32.xlu0 %v68, 58
    %v209 = vpop.permute.xlu0 %208
    %210 = vrot.lane.b32.xlu0 %v69, 58
    %v211 = vpop.permute.xlu0 %210
    %v214 = vsel %vm92, %v62, %v201
    %v215 = vsel %vm92, %v63, %v203
    %v216 = vsel %vm95, %v214, %v209
    %v217 = vsel %vm95, %v215, %v211
    %220 = vrot.lane.b32.xlu0 %v71, 29
    %v221 = vpop.permute.xlu0 %220
    %222 = vrot.lane.b32.xlu0 %v72, 29
    %v223 = vpop.permute.xlu0 %222
    %228 = vrot.lane.b32.xlu0 %v74, 58
    %v229 = vpop.permute.xlu0 %228
    %230 = vrot.lane.b32.xlu0 %v75, 58
    %v231 = vpop.permute.xlu0 %230
    %v234 = vsel %vm92, %v68, %v221
    %v235 = vsel %vm92, %v69, %v223
    %v236 = vsel %vm95, %v234, %v229
    %v237 = vsel %vm95, %v235, %v231
    %v238 = vld [vmem:[#allocation2] sm:$0xff]
    %v239 = vld [vmem:[#allocation2 + $0x8] sm:$0xff]
    %v240 = vld [vmem:[#allocation2 + $0x10] sm:$0xff]
    %v241 = vld [vmem:[#allocation2 + $0x18] sm:$0xff]
    %v242 = vld [vmem:[#allocation2 + $0x20] sm:$0xff]
    %v243 = vld [vmem:[#allocation2 + $0x28] sm:$0xff]
    %v244 = vld [vmem:[#allocation2 + $0x30] sm:$0xff]
    %v245 = vld [vmem:[#allocation2 + $0x38] sm:$0xff]
    %v246 = vld [vmem:[#allocation2 + $0x40] sm:$0xff]
    %v247 = vld [vmem:[#allocation2 + $0x48] sm:$0xff]
    %v248 = vld [vmem:[#allocation2 + $0x50] sm:$0x7f]
    %v249 = vld [vmem:[#allocation2 + $0x57] sm:$0x1]
    %v250 = vlaneseq
    %v251 = vshrl.u32 %v250, 7
    %v252 = vsub.s32 0, %v251
    %v253 = vrot.slane %v249, %v252
    %vm254 = vcmask 711680
    %v256 = vsel %vm254, %v96, 0
    %v259 = vsel %vm254, %v97, 0
    %v262 = vsel %vm254, %v116, 0
    %v265 = vsel %vm254, %v117, 0
    %v268 = vsel %vm254, %v136, 0
    %v271 = vsel %vm254, %v137, 0
    %v274 = vsel %vm254, %v156, 0
    %v277 = vsel %vm254, %v157, 0
    %v280 = vsel %vm254, %v176, 0
    %v283 = vsel %vm254, %v177, 0
    %v286 = vsel %vm254, %v196, 0
    %v289 = vsel %vm254, %v197, 0
    %v292 = vsel %vm254, %v216, 0
    %v295 = vsel %vm254, %v217, 0
    %v298 = vsel %vm254, %v236, 0
    %v301 = vsel %vm254, %v237, 0
    %vm303 = vcmask 1046528
    %v305 = vsel %vm303, %v248, 0
    %307 = vmatprep.subr.mxu0 0.0
    %308 = vmatpush1.msra.mxu0 %v238
    %309 = vmatprep.subr.mxu0 0.0
    %310 = vmatpush1.msra.mxu0 %v239
    %311 = vmatprep.subr.mxu0 0.0
    %312 = vmatpush1.msra.mxu0 %v240
    %313 = vmatprep.subr.mxu0 0.0
    %314 = vmatpush1.msra.mxu0 %v241
    %315 = vmatprep.subr.mxu0 0.0
    %316 = vmatpush1.msra.mxu0 %v242
    %317 = vmatprep.subr.mxu0 0.0
    %318 = vmatpush1.msra.mxu0 %v243
    %319 = vmatprep.subr.mxu0 0.0
    %320 = vmatpush1.msra.mxu0 %v244
    %321 = vmatprep.subr.mxu0 0.0
    %322 = vmatpush1.msra.mxu0 %v245
    %323 = vmatprep.subr.mxu0 0.0
    %324 = vmatpush1.msra.mxu0 %v246
    %325 = vmatprep.subr.mxu0 0.0
    %326 = vmatpush1.msra.mxu0 %v247
    %327 = vmatprep.subr.mxu0 0.0
    %328 = vmatpush1.msra.mxu0 %v305
    %329 = vmatprep.subr.mxu0 0.0
    %330 = vmatpush1.msra.mxu0 0.0
    %331 = vmatprep.subr.mxu0 0.0
    %332 = vmatpush1.msra.mxu0 0.0
    %333 = vmatprep.subr.mxu0 0.0
    %334 = vmatpush1.msra.mxu0 0.0
    %335 = vmatprep.subr.mxu0 0.0
    %336 = vmatpush1.msra.mxu0 0.0
    %337 = vmatprep.subr.mxu0 0.0
    %338 = vmatpush1.msra.mxu0 0.0
    %339 = vmatprep.subr.mxu0 0.0
    %340 = vmatpush1.msra.mxu0 0.0
    %341 = vmatprep.subr.mxu0 0.0
    %342 = vmatpush1.msra.mxu0 0.0
    %343 = vmatprep.subr.mxu0 0.0
    %344 = vmatpush1.msra.mxu0 0.0
    %345 = vmatprep.subr.mxu0 0.0
    %346 = vmatpush1.msra.mxu0 0.0
    %347 = vmatprep.subr.mxu0 0.0
    %348 = vmatpush1.msra.mxu0 0.0
    %349 = vmatprep.subr.mxu0 0.0
    %350 = vmatpush1.msra.mxu0 0.0
    %351 = vmatprep.subr.mxu0 0.0
    %352 = vmatpush1.msra.mxu0 0.0
    %353 = vmatprep.subr.mxu0 0.0
    %354 = vmatpush1.msra.mxu0 0.0
    %355 = vmatprep.subr.mxu0 0.0
    %356 = vmatpush1.msra.mxu0 0.0
    %357 = vmatprep.subr.mxu0 0.0
    %358 = vmatpush1.msra.mxu0 0.0
    %359 = vmatprep.subr.mxu0 0.0
    %360 = vmatpush1.msra.mxu0 0.0
    %361 = vmatprep.subr.mxu0 0.0
    %362 = vmatpush1.msra.mxu0 0.0
    %363 = vmatprep.subr.mxu0 0.0
    %364 = vmatpush1.msra.mxu0 0.0
    %365 = vmatprep.subr.mxu0 0.0
    %366 = vmatpush1.msra.mxu0 0.0
    %367 = vmatprep.subr.mxu0 0.0
    %368 = vmatpush1.msra.mxu0 0.0
    %369 = vmatprep.subr.mxu0 0.0
    %370 = vmatpush1.msra.mxu0 0.0
    %371 = vmatprep.mubr.f32.mxu0 0.0
    %372 = vmatmul.mubr.f32.gmra.mrb[0].mxu0 %v256
    %v373 = vpop.f32.mrb[0].mxu0
    %v374 = vadd.f32 %v253, %v373
    %v375 = vpop.f32.mrb[0].mxu0
    %376 = vmatprep.mubr.f32.mxu0 0.0
    %377 = vmatmul.mubr.f32.gmra.mrb[0].mxu0 %v259
    %v378 = vpop.f32.mrb[0].mxu0
    %v379 = vadd.f32 %v253, %v378
    %v380 = vpop.f32.mrb[0].mxu0
    %381 = vmatprep.mubr.f32.mxu0 0.0
    %382 = vmatmul.mubr.f32.gmra.mrb[0].mxu0 %v262
    %v383 = vpop.f32.mrb[0].mxu0
    %v384 = vadd.f32 %v253, %v383
    %v385 = vpop.f32.mrb[0].mxu0
    %386 = vmatprep.mubr.f32.mxu0 0.0
    %387 = vmatmul.mubr.f32.gmra.mrb[0].mxu0 %v265
    %v388 = vpop.f32.mrb[0].mxu0
    %v389 = vadd.f32 %v253, %v388
    %v390 = vpop.f32.mrb[0].mxu0
    %391 = vmatprep.mubr.f32.mxu0 0.0
    %392 = vmatmul.mubr.f32.gmra.mrb[0].mxu0 %v268
    %v393 = vpop.f32.mrb[0].mxu0
    %v394 = vadd.f32 %v253, %v393
    %v395 = vpop.f32.mrb[0].mxu0
    %396 = vmatprep.mubr.f32.mxu0 0.0
    %397 = vmatmul.mubr.f32.gmra.mrb[0].mxu0 %v271
    %v398 = vpop.f32.mrb[0].mxu0
    %v399 = vadd.f32 %v253, %v398
    %v400 = vpop.f32.mrb[0].mxu0
    %401 = vmatprep.mubr.f32.mxu0 0.0
    %402 = vmatmul.mubr.f32.gmra.mrb[0].mxu0 %v274
    %v403 = vpop.f32.mrb[0].mxu0
    %v404 = vadd.f32 %v253, %v403
    %v405 = vpop.f32.mrb[0].mxu0
    %406 = vmatprep.mubr.f32.mxu0 0.0
    %407 = vmatmul.mubr.f32.gmra.mrb[0].mxu0 %v277
    %v408 = vpop.f32.mrb[0].mxu0
    %v409 = vadd.f32 %v253, %v408
    %v410 = vpop.f32.mrb[0].mxu0
    %411 = vmatprep.mubr.f32.mxu0 0.0
    %412 = vmatmul.mubr.f32.gmra.mrb[0].mxu0 %v280
    %v413 = vpop.f32.mrb[0].mxu0
    %v414 = vadd.f32 %v253, %v413
    %v415 = vpop.f32.mrb[0].mxu0
    %416 = vmatprep.mubr.f32.mxu0 0.0
    %417 = vmatmul.mubr.f32.gmra.mrb[0].mxu0 %v283
    %v418 = vpop.f32.mrb[0].mxu0
    %v419 = vadd.f32 %v253, %v418
    %v420 = vpop.f32.mrb[0].mxu0
    %421 = vmatprep.mubr.f32.mxu0 0.0
    %422 = vmatmul.mubr.f32.gmra.mrb[0].mxu0 %v286
    %v423 = vpop.f32.mrb[0].mxu0
    %v424 = vadd.f32 %v253, %v423
    %v425 = vpop.f32.mrb[0].mxu0
    %426 = vmatprep.mubr.f32.mxu0 0.0
    %427 = vmatmul.mubr.f32.gmra.mrb[0].mxu0 %v289
    %v428 = vpop.f32.mrb[0].mxu0
    %v429 = vadd.f32 %v253, %v428
    %v430 = vpop.f32.mrb[0].mxu0
    %431 = vmatprep.mubr.f32.mxu0 0.0
    %432 = vmatmul.mubr.f32.gmra.mrb[0].mxu0 %v292
    %v433 = vpop.f32.mrb[0].mxu0
    %v434 = vadd.f32 %v253, %v433
    %v435 = vpop.f32.mrb[0].mxu0
    %436 = vmatprep.mubr.f32.mxu0 0.0
    %437 = vmatmul.mubr.f32.gmra.mrb[0].mxu0 %v295
    %v438 = vpop.f32.mrb[0].mxu0
    %v439 = vadd.f32 %v253, %v438
    %v440 = vpop.f32.mrb[0].mxu0
    %441 = vmatprep.mubr.f32.mxu0 0.0
    %442 = vmatmul.mubr.f32.gmra.mrb[0].mxu0 %v298
    %v443 = vpop.f32.mrb[0].mxu0
    %v444 = vadd.f32 %v253, %v443
    %v445 = vpop.f32.mrb[0].mxu0
    %446 = vmatprep.mubr.f32.mxu0 0.0
    %447 = vmatmul.mubr.f32.gmra.mrb[0].mxu0 %v301
    %v448 = vpop.f32.mrb[0].mxu0
    %v449 = vadd.f32 %v253, %v448
    %v450 = vpop.f32.mrb[0].mxu0
    %451 = vdwg.mxu0
    %vm452 = vcmp.gt.f32.partialorder %v374, 0.0
    %vm453 = vcmp.gt.f32.partialorder %v379, 0.0
    %vm454 = vcmp.gt.f32.partialorder %v384, 0.0
    %vm455 = vcmp.gt.f32.partialorder %v389, 0.0
    %vm456 = vcmp.gt.f32.partialorder %v394, 0.0
    %vm457 = vcmp.gt.f32.partialorder %v399, 0.0
    %vm458 = vcmp.gt.f32.partialorder %v404, 0.0
    %vm459 = vcmp.gt.f32.partialorder %v409, 0.0
    %vm460 = vcmp.gt.f32.partialorder %v414, 0.0
    %vm461 = vcmp.gt.f32.partialorder %v419, 0.0
    %vm462 = vcmp.gt.f32.partialorder %v424, 0.0
    %vm463 = vcmp.gt.f32.partialorder %v429, 0.0
    %vm464 = vcmp.gt.f32.partialorder %v434, 0.0
    %vm465 = vcmp.gt.f32.partialorder %v439, 0.0
    %vm466 = vcmp.gt.f32.partialorder %v444, 0.0
    %vm467 = vcmp.gt.f32.partialorder %v449, 0.0
    %v468 = vmul.f32 %v374, 0.02
    %v469 = vmul.f32 %v379, 0.02
    %v470 = vmul.f32 %v384, 0.02
    %v471 = vmul.f32 %v389, 0.02
    %v472 = vmul.f32 %v394, 0.02
    %v473 = vmul.f32 %v399, 0.02
    %v474 = vmul.f32 %v404, 0.02
    %v475 = vmul.f32 %v409, 0.02
    %v476 = vmul.f32 %v414, 0.02
    %v477 = vmul.f32 %v419, 0.02
    %v478 = vmul.f32 %v424, 0.02
    %v479 = vmul.f32 %v429, 0.02
    %v480 = vmul.f32 %v434, 0.02
    %v481 = vmul.f32 %v439, 0.02
    %v482 = vmul.f32 %v444, 0.02
    %v483 = vmul.f32 %v449, 0.02
    %v484 = vsel %vm452, %v374, %v468
    %v485 = vsel %vm453, %v379, %v469
    %v486 = vsel %vm454, %v384, %v470
    %v487 = vsel %vm455, %v389, %v471
    %v488 = vsel %vm456, %v394, %v472
    %v489 = vsel %vm457, %v399, %v473
    %v490 = vsel %vm458, %v404, %v474
    %v491 = vsel %vm459, %v409, %v475
    %v492 = vsel %vm460, %v414, %v476
    %v493 = vsel %vm461, %v419, %v477
    %v494 = vsel %vm462, %v424, %v478
    %v495 = vsel %vm463, %v429, %v479
    %v496 = vsel %vm464, %v434, %v480
    %v497 = vsel %vm465, %v439, %v481
    %v498 = vsel %vm466, %v444, %v482
    %v499 = vsel %vm467, %v449, %v483
    %502 = vrot.lane.b32.xlu0 %v484, 32
    %v503 = vpop.permute.xlu0 %502
    %504 = vrot.lane.b32.xlu0 %v485, 32
    %v505 = vpop.permute.xlu0 %504
    %510 = vrot.lane.b32.xlu0 %v486, 64
    %v511 = vpop.permute.xlu0 %510
    %512 = vrot.lane.b32.xlu0 %v487, 64
    %v513 = vpop.permute.xlu0 %512
    %vm516 = vcmask 261120
    %v517 = vsel %vm516, 0.0, %v503
    %v518 = vsel %vm516, 0.0, %v505
    %vm519 = vcmask 523264
    %v520 = vsel %vm519, %v517, %v511
    %v521 = vsel %vm519, %v518, %v513
    %524 = vrot.lane.b32.xlu0 %v488, 32
    %v525 = vpop.permute.xlu0 %524
    %526 = vrot.lane.b32.xlu0 %v489, 32
    %v527 = vpop.permute.xlu0 %526
    %532 = vrot.lane.b32.xlu0 %v490, 64
    %v533 = vpop.permute.xlu0 %532
    %534 = vrot.lane.b32.xlu0 %v491, 64
    %v535 = vpop.permute.xlu0 %534
    %v538 = vsel %vm516, %v486, %v525
    %v539 = vsel %vm516, %v487, %v527
    %v540 = vsel %vm519, %v538, %v533
    %v541 = vsel %vm519, %v539, %v535
    %544 = vrot.lane.b32.xlu0 %v492, 32
    %v545 = vpop.permute.xlu0 %544
    %546 = vrot.lane.b32.xlu0 %v493, 32
    %v547 = vpop.permute.xlu0 %546
    %552 = vrot.lane.b32.xlu0 %v494, 64
    %v553 = vpop.permute.xlu0 %552
    %554 = vrot.lane.b32.xlu0 %v495, 64
    %v555 = vpop.permute.xlu0 %554
    %v558 = vsel %vm516, %v490, %v545
    %v559 = vsel %vm516, %v491, %v547
    %v560 = vsel %vm519, %v558, %v553
    %v561 = vsel %vm519, %v559, %v555
    %564 = vrot.lane.b32.xlu0 %v496, 32
    %v565 = vpop.permute.xlu0 %564
    %566 = vrot.lane.b32.xlu0 %v497, 32
    %v567 = vpop.permute.xlu0 %566
    %572 = vrot.lane.b32.xlu0 %v498, 64
    %v573 = vpop.permute.xlu0 %572
    %574 = vrot.lane.b32.xlu0 %v499, 64
    %v575 = vpop.permute.xlu0 %574
    %v578 = vsel %vm516, %v494, %v565
    %v579 = vsel %vm516, %v495, %v567
    %v580 = vsel %vm519, %v578, %v573
    %v581 = vsel %vm519, %v579, %v575
    %v582 = vld [vmem:[#allocation2 + $0x58] sm:$0xff]
    %v583 = vld [vmem:[#allocation2 + $0x60] sm:$0xff]
    %v584 = vld [vmem:[#allocation2 + $0x68] sm:$0xff]
    %v585 = vld [vmem:[#allocation2 + $0x70] sm:$0xff]
    %v586 = vld [vmem:[#allocation2 + $0x78] sm:$0xff]
    %v587 = vld [vmem:[#allocation2 + $0x80] sm:$0xff]
    %v588 = vld [vmem:[#allocation2 + $0x88] sm:$0xff]
    %v589 = vld [vmem:[#allocation2 + $0x90] sm:$0xff]
    %v590 = vld [vmem:[#allocation2 + $0x98] sm:$0xff]
    %v591 = vld [vmem:[#allocation2 + $0xa0] sm:$0xff]
    %v592 = vld [vmem:[#allocation2 + $0xa8] sm:$0xff]
    %v593 = vld [vmem:[#allocation2 + $0xb0] sm:$0xff]
    %v594 = vld [vmem:[#allocation2 + $0xb8] sm:$0x1]
    %v595 = vlaneseq
    %v596 = vshrl.u32 %v595, 7
    %v597 = vsub.s32 0, %v596
    %v598 = vrot.slane %v594, %v597
    %vm599 = vcmask 785408
    %v601 = vsel %vm599, %v520, 0
    %v604 = vsel %vm599, %v521, 0
    %v607 = vsel %vm599, %v540, 0
    %v610 = vsel %vm599, %v541, 0
    %v613 = vsel %vm599, %v560, 0
    %v616 = vsel %vm599, %v561, 0
    %v619 = vsel %vm599, %v580, 0
    %v622 = vsel %vm599, %v581, 0
    %624 = vmatprep.subr.mxu0 0.0
    %625 = vmatpush1.msra.mxu0 %v582
    %626 = vmatprep.subr.mxu0 0.0
    %627 = vmatpush1.msra.mxu0 %v583
    %628 = vmatprep.subr.mxu0 0.0
    %629 = vmatpush1.msra.mxu0 %v584
    %630 = vmatprep.subr.mxu0 0.0
    %631 = vmatpush1.msra.mxu0 %v585
    %632 = vmatprep.subr.mxu0 0.0
    %633 = vmatpush1.msra.mxu0 %v586
    %634 = vmatprep.subr.mxu0 0.0
    %635 = vmatpush1.msra.mxu0 %v587
    %636 = vmatprep.subr.mxu0 0.0
    %637 = vmatpush1.msra.mxu0 %v588
    %638 = vmatprep.subr.mxu0 0.0
    %639 = vmatpush1.msra.mxu0 %v589
    %640 = vmatprep.subr.mxu0 0.0
    %641 = vmatpush1.msra.mxu0 %v590
    %642 = vmatprep.subr.mxu0 0.0
    %643 = vmatpush1.msra.mxu0 %v591
    %644 = vmatprep.subr.mxu0 0.0
    %645 = vmatpush1.msra.mxu0 %v592
    %646 = vmatprep.subr.mxu0 0.0
    %647 = vmatpush1.msra.mxu0 %v593
    %648 = vmatprep.subr.mxu0 0.0
    %649 = vmatpush1.msra.mxu0 0.0
    %650 = vmatprep.subr.mxu0 0.0
    %651 = vmatpush1.msra.mxu0 0.0
    %652 = vmatprep.subr.mxu0 0.0
    %653 = vmatpush1.msra.mxu0 0.0
    %654 = vmatprep.subr.mxu0 0.0
    %655 = vmatpush1.msra.mxu0 0.0
    %656 = vmatprep.subr.mxu0 0.0
    %657 = vmatpush1.msra.mxu0 0.0
    %658 = vmatprep.subr.mxu0 0.0
    %659 = vmatpush1.msra.mxu0 0.0
    %660 = vmatprep.subr.mxu0 0.0
    %661 = vmatpush1.msra.mxu0 0.0
    %662 = vmatprep.subr.mxu0 0.0
    %663 = vmatpush1.msra.mxu0 0.0
    %664 = vmatprep.subr.mxu0 0.0
    %665 = vmatpush1.msra.mxu0 0.0
    %666 = vmatprep.subr.mxu0 0.0
    %667 = vmatpush1.msra.mxu0 0.0
    %668 = vmatprep.subr.mxu0 0.0
    %669 = vmatpush1.msra.mxu0 0.0
    %670 = vmatprep.subr.mxu0 0.0
    %671 = vmatpush1.msra.mxu0 0.0
    %672 = vmatprep.subr.mxu0 0.0
    %673 = vmatpush1.msra.mxu0 0.0
    %674 = vmatprep.subr.mxu0 0.0
    %675 = vmatpush1.msra.mxu0 0.0
    %676 = vmatprep.subr.mxu0 0.0
    %677 = vmatpush1.msra.mxu0 0.0
    %678 = vmatprep.subr.mxu0 0.0
    %679 = vmatpush1.msra.mxu0 0.0
    %680 = vmatprep.subr.mxu0 0.0
    %681 = vmatpush1.msra.mxu0 0.0
    %682 = vmatprep.subr.mxu0 0.0
    %683 = vmatpush1.msra.mxu0 0.0
    %684 = vmatprep.subr.mxu0 0.0
    %685 = vmatpush1.msra.mxu0 0.0
    %686 = vmatprep.subr.mxu0 0.0
    %687 = vmatpush1.msra.mxu0 0.0
    %688 = vmatprep.mubr.f32.mxu0 0.0
    %689 = vmatmul.mubr.f32.gmra.mrb[0].mxu0 %v601
    %v690 = vpop.f32.mrb[0].mxu0
    %v691 = vadd.f32 %v598, %v690
    %v692 = vpop.f32.mrb[0].mxu0
    %693 = vmatprep.mubr.f32.mxu0 0.0
    %694 = vmatmul.mubr.f32.gmra.mrb[0].mxu0 %v604
    %v695 = vpop.f32.mrb[0].mxu0
    %v696 = vadd.f32 %v598, %v695
    %v697 = vpop.f32.mrb[0].mxu0
    %698 = vmatprep.mubr.f32.mxu0 0.0
    %699 = vmatmul.mubr.f32.gmra.mrb[0].mxu0 %v607
    %v700 = vpop.f32.mrb[0].mxu0
    %v701 = vadd.f32 %v598, %v700
    %v702 = vpop.f32.mrb[0].mxu0
    %703 = vmatprep.mubr.f32.mxu0 0.0
    %704 = vmatmul.mubr.f32.gmra.mrb[0].mxu0 %v610
    %v705 = vpop.f32.mrb[0].mxu0
    %v706 = vadd.f32 %v598, %v705
    %v707 = vpop.f32.mrb[0].mxu0
    %708 = vmatprep.mubr.f32.mxu0 0.0
    %709 = vmatmul.mubr.f32.gmra.mrb[0].mxu0 %v613
    %v710 = vpop.f32.mrb[0].mxu0
    %v711 = vadd.f32 %v598, %v710
    %v712 = vpop.f32.mrb[0].mxu0
    %713 = vmatprep.mubr.f32.mxu0 0.0
    %714 = vmatmul.mubr.f32.gmra.mrb[0].mxu0 %v616
    %v715 = vpop.f32.mrb[0].mxu0
    %v716 = vadd.f32 %v598, %v715
    %v717 = vpop.f32.mrb[0].mxu0
    %718 = vmatprep.mubr.f32.mxu0 0.0
    %719 = vmatmul.mubr.f32.gmra.mrb[0].mxu0 %v619
    %v720 = vpop.f32.mrb[0].mxu0
    %v721 = vadd.f32 %v598, %v720
    %v722 = vpop.f32.mrb[0].mxu0
    %723 = vmatprep.mubr.f32.mxu0 0.0
    %724 = vmatmul.mubr.f32.gmra.mrb[0].mxu0 %v622
    %v725 = vpop.f32.mrb[0].mxu0
    %v726 = vadd.f32 %v598, %v725
    %v727 = vpop.f32.mrb[0].mxu0
    %728 = vdwg.mxu0
    %vm729 = vcmp.gt.f32.partialorder %v691, 0.0
    %vm730 = vcmp.gt.f32.partialorder %v696, 0.0
    %vm731 = vcmp.gt.f32.partialorder %v701, 0.0
    %vm732 = vcmp.gt.f32.partialorder %v706, 0.0
    %vm733 = vcmp.gt.f32.partialorder %v711, 0.0
    %vm734 = vcmp.gt.f32.partialorder %v716, 0.0
    %vm735 = vcmp.gt.f32.partialorder %v721, 0.0
    %vm736 = vcmp.gt.f32.partialorder %v726, 0.0
    %v737 = vmul.f32 %v691, 0.02
    %v738 = vmul.f32 %v696, 0.02
    %v739 = vmul.f32 %v701, 0.02
    %v740 = vmul.f32 %v706, 0.02
    %v741 = vmul.f32 %v711, 0.02
    %v742 = vmul.f32 %v716, 0.02
    %v743 = vmul.f32 %v721, 0.02
    %v744 = vmul.f32 %v726, 0.02
    %v745 = vsel %vm729, %v691, %v737
    %v746 = vsel %vm730, %v696, %v738
    %v747 = vsel %vm731, %v701, %v739
    %v748 = vsel %vm732, %v706, %v740
    %v749 = vsel %vm733, %v711, %v741
    %v750 = vsel %vm734, %v716, %v742
    %v751 = vsel %vm735, %v721, %v743
    %v752 = vsel %vm736, %v726, %v744
    %755 = vrot.lane.b32.xlu0 %v745, 32
    %v756 = vpop.permute.xlu0 %755
    %757 = vrot.lane.b32.xlu0 %v746, 32
    %v758 = vpop.permute.xlu0 %757
    %763 = vrot.lane.b32.xlu0 %v747, 64
    %v764 = vpop.permute.xlu0 %763
    %765 = vrot.lane.b32.xlu0 %v748, 64
    %v766 = vpop.permute.xlu0 %765
    %v769 = vsel %vm516, 0.0, %v756
    %v770 = vsel %vm516, 0.0, %v758
    %v771 = vsel %vm519, %v769, %v764
    %v772 = vsel %vm519, %v770, %v766
    %775 = vrot.lane.b32.xlu0 %v749, 32
    %v776 = vpop.permute.xlu0 %775
    %777 = vrot.lane.b32.xlu0 %v750, 32
    %v778 = vpop.permute.xlu0 %777
    %783 = vrot.lane.b32.xlu0 %v751, 64
    %v784 = vpop.permute.xlu0 %783
    %785 = vrot.lane.b32.xlu0 %v752, 64
    %v786 = vpop.permute.xlu0 %785
    %v789 = vsel %vm516, %v747, %v776
    %v790 = vsel %vm516, %v748, %v778
    %v791 = vsel %vm519, %v789, %v784
    %v792 = vsel %vm519, %v790, %v786
    %v793 = vld [vmem:[#allocation2 + $0xc0] sm:$0xff]
    %v794 = vld [vmem:[#allocation2 + $0xc8] sm:$0xff]
    %v795 = vld [vmem:[#allocation2 + $0xd0] sm:$0xff]
    %v796 = vld [vmem:[#allocation2 + $0xd8] sm:$0xff]
    %v797 = vld [vmem:[#allocation2 + $0xe0] sm:$0xff]
    %v798 = vld [vmem:[#allocation2 + $0xe8] sm:$0xff]
    %v799 = vld [vmem:[#allocation2 + $0xf0] sm:$0xff]
    %v800 = vld [vmem:[#allocation2 + $0xf8] sm:$0xff]
    %v801 = vld [vmem:[#allocation2 + $0x100] sm:$0xff]
    %v802 = vld [vmem:[#allocation2 + $0x108] sm:$0xff]
    %v803 = vld [vmem:[#allocation2 + $0x110] sm:$0xff]
    %v804 = vld [vmem:[#allocation2 + $0x118] sm:$0xff]
    %v805 = vld [vmem:[#allocation2 + $0x120] sm:$0x1]
    %v806 = vlaneseq
    %v807 = vshrl.u32 %v806, 7
    %v808 = vsub.s32 0, %v807
    %v809 = vrot.slane %v805, %v808
    %v811 = vsel %vm599, %v771, 0
    %v814 = vsel %vm599, %v772, 0
    %v817 = vsel %vm599, %v791, 0
    %v820 = vsel %vm599, %v792, 0
    %822 = vmatprep.subr.mxu0 0.0
    %823 = vmatpush1.msra.mxu0 %v793
    %824 = vmatprep.subr.mxu0 0.0
    %825 = vmatpush1.msra.mxu0 %v794
    %826 = vmatprep.subr.mxu0 0.0
    %827 = vmatpush1.msra.mxu0 %v795
    %828 = vmatprep.subr.mxu0 0.0
    %829 = vmatpush1.msra.mxu0 %v796
    %830 = vmatprep.subr.mxu0 0.0
    %831 = vmatpush1.msra.mxu0 %v797
    %832 = vmatprep.subr.mxu0 0.0
    %833 = vmatpush1.msra.mxu0 %v798
    %834 = vmatprep.subr.mxu0 0.0
    %835 = vmatpush1.msra.mxu0 %v799
    %836 = vmatprep.subr.mxu0 0.0
    %837 = vmatpush1.msra.mxu0 %v800
    %838 = vmatprep.subr.mxu0 0.0
    %839 = vmatpush1.msra.mxu0 %v801
    %840 = vmatprep.subr.mxu0 0.0
    %841 = vmatpush1.msra.mxu0 %v802
    %842 = vmatprep.subr.mxu0 0.0
    %843 = vmatpush1.msra.mxu0 %v803
    %844 = vmatprep.subr.mxu0 0.0
    %845 = vmatpush1.msra.mxu0 %v804
    %846 = vmatprep.subr.mxu0 0.0
    %847 = vmatpush1.msra.mxu0 0.0
    %848 = vmatprep.subr.mxu0 0.0
    %849 = vmatpush1.msra.mxu0 0.0
    %850 = vmatprep.subr.mxu0 0.0
    %851 = vmatpush1.msra.mxu0 0.0
    %852 = vmatprep.subr.mxu0 0.0
    %853 = vmatpush1.msra.mxu0 0.0
    %854 = vmatprep.subr.mxu0 0.0
    %855 = vmatpush1.msra.mxu0 0.0
    %856 = vmatprep.subr.mxu0 0.0
    %857 = vmatpush1.msra.mxu0 0.0
    %858 = vmatprep.subr.mxu0 0.0
    %859 = vmatpush1.msra.mxu0 0.0
    %860 = vmatprep.subr.mxu0 0.0
    %861 = vmatpush1.msra.mxu0 0.0
    %862 = vmatprep.subr.mxu0 0.0
    %863 = vmatpush1.msra.mxu0 0.0
    %864 = vmatprep.subr.mxu0 0.0
    %865 = vmatpush1.msra.mxu0 0.0
    %866 = vmatprep.subr.mxu0 0.0
    %867 = vmatpush1.msra.mxu0 0.0
    %868 = vmatprep.subr.mxu0 0.0
    %869 = vmatpush1.msra.mxu0 0.0
    %870 = vmatprep.subr.mxu0 0.0
    %871 = vmatpush1.msra.mxu0 0.0
    %872 = vmatprep.subr.mxu0 0.0
    %873 = vmatpush1.msra.mxu0 0.0
    %874 = vmatprep.subr.mxu0 0.0
    %875 = vmatpush1.msra.mxu0 0.0
    %876 = vmatprep.subr.mxu0 0.0
    %877 = vmatpush1.msra.mxu0 0.0
    %878 = vmatprep.subr.mxu0 0.0
    %879 = vmatpush1.msra.mxu0 0.0
    %880 = vmatprep.subr.mxu0 0.0
    %881 = vmatpush1.msra.mxu0 0.0
    %882 = vmatprep.subr.mxu0 0.0
    %883 = vmatpush1.msra.mxu0 0.0
    %884 = vmatprep.subr.mxu0 0.0
    %885 = vmatpush1.msra.mxu0 0.0
    %886 = vmatprep.mubr.f32.mxu0 0.0
    %887 = vmatmul.mubr.f32.gmra.mrb[0].mxu0 %v811
    %v888 = vpop.f32.mrb[0].mxu0
    %v889 = vadd.f32 %v809, %v888
    %v890 = vpop.f32.mrb[0].mxu0
    %891 = vmatprep.mubr.f32.mxu0 0.0
    %892 = vmatmul.mubr.f32.gmra.mrb[0].mxu0 %v814
    %v893 = vpop.f32.mrb[0].mxu0
    %v894 = vadd.f32 %v809, %v893
    %v895 = vpop.f32.mrb[0].mxu0
    %896 = vmatprep.mubr.f32.mxu0 0.0
    %897 = vmatmul.mubr.f32.gmra.mrb[0].mxu0 %v817
    %v898 = vpop.f32.mrb[0].mxu0
    %v899 = vadd.f32 %v809, %v898
    %v900 = vpop.f32.mrb[0].mxu0
    %901 = vmatprep.mubr.f32.mxu0 0.0
    %902 = vmatmul.mubr.f32.gmra.mrb[0].mxu0 %v820
    %v903 = vpop.f32.mrb[0].mxu0
    %v904 = vadd.f32 %v809, %v903
    %v905 = vpop.f32.mrb[0].mxu0
    %906 = vdwg.mxu0
    %vm907 = vcmp.gt.f32.partialorder %v889, 0.0
    %vm908 = vcmp.gt.f32.partialorder %v894, 0.0
    %vm909 = vcmp.gt.f32.partialorder %v899, 0.0
    %vm910 = vcmp.gt.f32.partialorder %v904, 0.0
    %v911 = vmul.f32 %v889, 0.2
    %v912 = vmul.f32 %v894, 0.2
    %v913 = vmul.f32 %v899, 0.2
    %v914 = vmul.f32 %v904, 0.2
    %v915 = vsel %vm907, %v889, %v911
    %v916 = vsel %vm908, %v894, %v912
    %v917 = vsel %vm909, %v899, %v913
    %v918 = vsel %vm910, %v904, %v914
    %921 = vrot.lane.b32.xlu0 %v915, 64
    %v922 = vpop.permute.xlu0 %921
    %923 = vrot.lane.b32.xlu0 %v916, 64
    %v924 = vpop.permute.xlu0 %923
    %v927 = vsel %vm519, 0.0, %v922
    %v928 = vsel %vm519, 0.0, %v924
    %v929 = vld [vmem:[#allocation2 + $0x128] sm:$0xff]
    %v930 = vld [vmem:[#allocation2 + $0x130] sm:$0xff]
    %v931 = vld [vmem:[#allocation2 + $0x138] sm:$0xff]
    %v932 = vld [vmem:[#allocation2 + $0x140] sm:$0xff]
    %v933 = vld [vmem:[#allocation2 + $0x148] sm:$0xff]
    %v934 = vld [vmem:[#allocation2 + $0x150] sm:$0xff]
    %v935 = vld [vmem:[#allocation2 + $0x158] sm:$0xff]
    %v936 = vld [vmem:[#allocation2 + $0x160] sm:$0xff]
    %v937 = vld [vmem:[#allocation2 + $0x168] sm:$0xff]
    %v938 = vld [vmem:[#allocation2 + $0x170] sm:$0xff]
    %v939 = vld [vmem:[#allocation2 + $0x178] sm:$0xff]
    %v940 = vld [vmem:[#allocation2 + $0x180] sm:$0xff]
    %v941 = vld [vmem:[#allocation2 + $0x188] sm:$0xff]
    %v942 = vld [vmem:[#allocation2 + $0x190] sm:$0xff]
    %v943 = vld [vmem:[#allocation2 + $0x198] sm:$0xff]
    %v944 = vld [vmem:[#allocation2 + $0x1a0] sm:$0xff]
    %v945 = vld [vmem:[#allocation2 + $0x1a8] sm:$0xff]
    %v946 = vld [vmem:[#allocation2 + $0x1b0] sm:$0xff]
    %v947 = vld [vmem:[#allocation2 + $0x1b8] sm:$0xff]
    %v948 = vld [vmem:[#allocation2 + $0x1c0] sm:$0xff]
    %v949 = vld [vmem:[#allocation2 + $0x1c8] sm:$0xff]
    %v950 = vld [vmem:[#allocation2 + $0x1d0] sm:$0xff]
    %v951 = vld [vmem:[#allocation2 + $0x1d8] sm:$0xff]
    %v952 = vld [vmem:[#allocation2 + $0x1e0] sm:$0xff]
    %v953 = vld [vmem:[#allocation2 + $0x1e8] sm:$0x1]
    %v954 = vlaneseq
    %v955 = vshrl.u32 %v954, 7
    %v956 = vsub.s32 0, %v955
    %v957 = vrot.slane %v953, %v956
    %v959 = vsel %vm519, %v917, 0
    %v962 = vsel %vm519, %v918, 0
    %964 = vmatprep.subr.mxu0 0.0
    %965 = vmatpush1.msra.mxu0 %v929
    %966 = vmatprep.subr.mxu0 0.0
    %967 = vmatpush1.msra.mxu0 %v930
    %968 = vmatprep.subr.mxu0 0.0
    %969 = vmatpush1.msra.mxu0 %v931
    %970 = vmatprep.subr.mxu0 0.0
    %971 = vmatpush1.msra.mxu0 %v932
    %972 = vmatprep.subr.mxu0 0.0
    %973 = vmatpush1.msra.mxu0 %v933
    %974 = vmatprep.subr.mxu0 0.0
    %975 = vmatpush1.msra.mxu0 %v934
    %976 = vmatprep.subr.mxu0 0.0
    %977 = vmatpush1.msra.mxu0 %v935
    %978 = vmatprep.subr.mxu0 0.0
    %979 = vmatpush1.msra.mxu0 %v936
    %980 = vmatprep.subr.mxu0 0.0
    %981 = vmatpush1.msra.mxu0 %v937
    %982 = vmatprep.subr.mxu0 0.0
    %983 = vmatpush1.msra.mxu0 %v938
    %984 = vmatprep.subr.mxu0 0.0
    %985 = vmatpush1.msra.mxu0 %v939
    %986 = vmatprep.subr.mxu0 0.0
    %987 = vmatpush1.msra.mxu0 %v940
    %988 = vmatprep.subr.mxu0 0.0
    %989 = vmatpush1.msra.mxu0 %v941
    %990 = vmatprep.subr.mxu0 0.0
    %991 = vmatpush1.msra.mxu0 %v942
    %992 = vmatprep.subr.mxu0 0.0
    %993 = vmatpush1.msra.mxu0 %v943
    %994 = vmatprep.subr.mxu0 0.0
    %995 = vmatpush1.msra.mxu0 %v944
    %996 = vmatprep.subr.mxu0 0.0
    %997 = vmatpush1.msra.mxu0 %v945
    %998 = vmatprep.subr.mxu0 0.0
    %999 = vmatpush1.msra.mxu0 %v946
    %1000 = vmatprep.subr.mxu0 0.0
    %1001 = vmatpush1.msra.mxu0 %v947
    %1002 = vmatprep.subr.mxu0 0.0
    %1003 = vmatpush1.msra.mxu0 %v948
    %1004 = vmatprep.subr.mxu0 0.0
    %1005 = vmatpush1.msra.mxu0 %v949
    %1006 = vmatprep.subr.mxu0 0.0
    %1007 = vmatpush1.msra.mxu0 %v950
    %1008 = vmatprep.subr.mxu0 0.0
    %1009 = vmatpush1.msra.mxu0 %v951
    %1010 = vmatprep.subr.mxu0 0.0
    %1011 = vmatpush1.msra.mxu0 %v952
    %1012 = vmatprep.subr.mxu0 0.0
    %1013 = vmatpush1.msra.mxu0 0.0
    %1014 = vmatprep.subr.mxu0 0.0
    %1015 = vmatpush1.msra.mxu0 0.0
    %1016 = vmatprep.subr.mxu0 0.0
    %1017 = vmatpush1.msra.mxu0 0.0
    %1018 = vmatprep.subr.mxu0 0.0
    %1019 = vmatpush1.msra.mxu0 0.0
    %1020 = vmatprep.subr.mxu0 0.0
    %1021 = vmatpush1.msra.mxu0 0.0
    %1022 = vmatprep.subr.mxu0 0.0
    %1023 = vmatpush1.msra.mxu0 0.0
    %1024 = vmatprep.subr.mxu0 0.0
    %1025 = vmatpush1.msra.mxu0 0.0
    %1026 = vmatprep.subr.mxu0 0.0
    %1027 = vmatpush1.msra.mxu0 0.0
    %1028 = vmatprep.mubr.f32.mxu0 %v959
    %1029 = vmatmul.mubr.f32.gmra.mrb[0].mxu0 %v927
    %v1030 = vpop.f32.mrb[0].mxu0
    %v1031 = vadd.f32 %v957, %v1030
    %v1032 = vpop.f32.mrb[0].mxu0
    %1033 = vmatprep.mubr.f32.mxu0 %v962
    %1034 = vmatmul.mubr.f32.gmra.mrb[0].mxu0 %v928
    %v1035 = vpop.f32.mrb[0].mxu0
    %v1036 = vadd.f32 %v957, %v1035
    %v1037 = vpop.f32.mrb[0].mxu0
    %1038 = vdwg.mxu0
    %vm1039 = vcmp.gt.f32.partialorder %v1031, 0.0
    %vm1040 = vcmp.gt.f32.partialorder %v1036, 0.0
    %v1041 = vmul.f32 %v1031, 0.2
    %v1042 = vmul.f32 %v1036, 0.2
    %v1043 = vsel %vm1039, %v1031, %v1041
    %v1044 = vsel %vm1040, %v1036, %v1042
    %v1045 = vld [vmem:[#allocation2 + $0x1f0] sm:$0xff]
    %v1046 = vld [vmem:[#allocation2 + $0x1f8] sm:$0xff]
    %v1047 = vld [vmem:[#allocation2 + $0x200] sm:$0xff]
    %v1048 = vld [vmem:[#allocation2 + $0x208] sm:$0xff]
    %v1049 = vld [vmem:[#allocation2 + $0x210] sm:$0xff]
    %v1050 = vld [vmem:[#allocation2 + $0x218] sm:$0xff]
    %v1051 = vld [vmem:[#allocation2 + $0x220] sm:$0xff]
    %v1052 = vld [vmem:[#allocation2 + $0x228] sm:$0xff]
    %v1053 = vld [vmem:[#allocation2 + $0x230] sm:$0x1]
    %v1054 = vlaneseq
    %v1055 = vshrl.u32 %v1054, 7
    %v1056 = vsub.s32 0, %v1055
    %v1057 = vrot.slane %v1053, %v1056
    %v1059 = vsel %vm519, %v1043, 0
    %v1062 = vsel %vm519, %v1044, 0
    %1064 = vmatprep.subr.mxu0 0.0
    %1065 = vmatpush1.msra.mxu0 %v1045
    %1066 = vmatprep.subr.mxu0 0.0
    %1067 = vmatpush1.msra.mxu0 %v1046
    %1068 = vmatprep.subr.mxu0 0.0
    %1069 = vmatpush1.msra.mxu0 %v1047
    %1070 = vmatprep.subr.mxu0 0.0
    %1071 = vmatpush1.msra.mxu0 %v1048
    %1072 = vmatprep.subr.mxu0 0.0
    %1073 = vmatpush1.msra.mxu0 %v1049
    %1074 = vmatprep.subr.mxu0 0.0
    %1075 = vmatpush1.msra.mxu0 %v1050
    %1076 = vmatprep.subr.mxu0 0.0
    %1077 = vmatpush1.msra.mxu0 %v1051
    %1078 = vmatprep.subr.mxu0 0.0
    %1079 = vmatpush1.msra.mxu0 %v1052
    %1080 = vmatprep.subr.mxu0 0.0
    %1081 = vmatpush1.msra.mxu0 0.0
    %1082 = vmatprep.subr.mxu0 0.0
    %1083 = vmatpush1.msra.mxu0 0.0
    %1084 = vmatprep.subr.mxu0 0.0
    %1085 = vmatpush1.msra.mxu0 0.0
    %1086 = vmatprep.subr.mxu0 0.0
    %1087 = vmatpush1.msra.mxu0 0.0
    %1088 = vmatprep.subr.mxu0 0.0
    %1089 = vmatpush1.msra.mxu0 0.0
    %1090 = vmatprep.subr.mxu0 0.0
    %1091 = vmatpush1.msra.mxu0 0.0
    %1092 = vmatprep.subr.mxu0 0.0
    %1093 = vmatpush1.msra.mxu0 0.0
    %1094 = vmatprep.subr.mxu0 0.0
    %1095 = vmatpush1.msra.mxu0 0.0
    %1096 = vmatprep.subr.mxu0 0.0
    %1097 = vmatpush1.msra.mxu0 0.0
    %1098 = vmatprep.subr.mxu0 0.0
    %1099 = vmatpush1.msra.mxu0 0.0
    %1100 = vmatprep.subr.mxu0 0.0
    %1101 = vmatpush1.msra.mxu0 0.0
    %1102 = vmatprep.subr.mxu0 0.0
    %1103 = vmatpush1.msra.mxu0 0.0
    %1104 = vmatprep.subr.mxu0 0.0
    %1105 = vmatpush1.msra.mxu0 0.0
    %1106 = vmatprep.subr.mxu0 0.0
    %1107 = vmatpush1.msra.mxu0 0.0
    %1108 = vmatprep.subr.mxu0 0.0
    %1109 = vmatpush1.msra.mxu0 0.0
    %1110 = vmatprep.subr.mxu0 0.0
    %1111 = vmatpush1.msra.mxu0 0.0
    %1112 = vmatprep.subr.mxu0 0.0
    %1113 = vmatpush1.msra.mxu0 0.0
    %1114 = vmatprep.subr.mxu0 0.0
    %1115 = vmatpush1.msra.mxu0 0.0
    %1116 = vmatprep.subr.mxu0 0.0
    %1117 = vmatpush1.msra.mxu0 0.0
    %1118 = vmatprep.subr.mxu0 0.0
    %1119 = vmatpush1.msra.mxu0 0.0
    %1120 = vmatprep.subr.mxu0 0.0
    %1121 = vmatpush1.msra.mxu0 0.0
    %1122 = vmatprep.subr.mxu0 0.0
    %1123 = vmatpush1.msra.mxu0 0.0
    %1124 = vmatprep.subr.mxu0 0.0
    %1125 = vmatpush1.msra.mxu0 0.0
    %1126 = vmatprep.subr.mxu0 0.0
    %1127 = vmatpush1.msra.mxu0 0.0
    %1128 = vmatprep.mubr.f32.mxu0 0.0
    %1129 = vmatmul.mubr.f32.gmra.mrb[0].mxu0 %v1059
    %v1130 = vpop.f32.mrb[0].mxu0
    %v1131 = vadd.f32 %v1057, %v1130
    %v1132 = vpop.f32.mrb[0].mxu0
    %1133 = vmatprep.mubr.f32.mxu0 0.0
    %1134 = vmatmul.mubr.f32.gmra.mrb[0].mxu0 %v1062
    %v1135 = vpop.f32.mrb[0].mxu0
    %v1136 = vadd.f32 %v1057, %v1135
    %v1137 = vpop.f32.mrb[0].mxu0
    %1138 = vdwg.mxu0
    %vm1139 = vcmp.gt.f32.partialorder %v1131, 0.0
    %vm1140 = vcmp.gt.f32.partialorder %v1136, 0.0
    %v1141 = vmul.f32 %v1131, 0.02
    %v1142 = vmul.f32 %v1136, 0.02
    %v1143 = vsel %vm1139, %v1131, %v1141
    %v1144 = vsel %vm1140, %v1136, %v1142
    %v1145 = vld [vmem:[#allocation2 + $0x238] sm:$0xff]
    %v1146 = vld [vmem:[#allocation2 + $0x240] sm:$0xff]
    %v1147 = vld [vmem:[#allocation2 + $0x248] sm:$0xff]
    %v1148 = vld [vmem:[#allocation2 + $0x250] sm:$0xff]
    %v1149 = vld [vmem:[#allocation2 + $0x258] sm:$0xff]
    %v1150 = vld [vmem:[#allocation2 + $0x260] sm:$0xff]
    %v1151 = vld [vmem:[#allocation2 + $0x268] sm:$0xff]
    %v1152 = vld [vmem:[#allocation2 + $0x270] sm:$0xff]
    %v1153 = vld [vmem:[#allocation2 + $0x278] sm:$0xff]
    %v1154 = vld [vmem:[#allocation2 + $0x280] sm:$0xff]
    %v1155 = vld [vmem:[#allocation2 + $0x288] sm:$0xff]
    %v1156 = vld [vmem:[#allocation2 + $0x290] sm:$0xff]
    %v1157 = vld [vmem:[#allocation2 + $0x298] sm:$0xff]
    %v1158 = vld [vmem:[#allocation2 + $0x2a0] sm:$0xff]
    %v1159 = vld [vmem:[#allocation2 + $0x2a8] sm:$0xff]
    %v1160 = vld [vmem:[#allocation2 + $0x2b0] sm:$0xff]
    %v1161 = vld [vmem:[#allocation2 + $0x2b8] sm:$0x1]
    %v1162 = vlaneseq
    %v1163 = vshrl.u32 %v1162, 7
    %v1164 = vsub.s32 0, %v1163
    %v1165 = vrot.slane %v1161, %v1164
    %1166 = vmatprep.subr.mxu0 0.0
    %1167 = vmatpush1.msra.mxu0 %v1145
    %1168 = vmatprep.subr.mxu0 0.0
    %1169 = vmatpush1.msra.mxu0 %v1146
    %1170 = vmatprep.subr.mxu0 0.0
    %1171 = vmatpush1.msra.mxu0 %v1147
    %1172 = vmatprep.subr.mxu0 0.0
    %1173 = vmatpush1.msra.mxu0 %v1148
    %1174 = vmatprep.subr.mxu0 0.0
    %1175 = vmatpush1.msra.mxu0 %v1149
    %1176 = vmatprep.subr.mxu0 0.0
    %1177 = vmatpush1.msra.mxu0 %v1150
    %1178 = vmatprep.subr.mxu0 0.0
    %1179 = vmatpush1.msra.mxu0 %v1151
    %1180 = vmatprep.subr.mxu0 0.0
    %1181 = vmatpush1.msra.mxu0 %v1152
    %1182 = vmatprep.subr.mxu0 0.0
    %1183 = vmatpush1.msra.mxu0 %v1153
    %1184 = vmatprep.subr.mxu0 0.0
    %1185 = vmatpush1.msra.mxu0 %v1154
    %1186 = vmatprep.subr.mxu0 0.0
    %1187 = vmatpush1.msra.mxu0 %v1155
    %1188 = vmatprep.subr.mxu0 0.0
    %1189 = vmatpush1.msra.mxu0 %v1156
    %1190 = vmatprep.subr.mxu0 0.0
    %1191 = vmatpush1.msra.mxu0 %v1157
    %1192 = vmatprep.subr.mxu0 0.0
    %1193 = vmatpush1.msra.mxu0 %v1158
    %1194 = vmatprep.subr.mxu0 0.0
    %1195 = vmatpush1.msra.mxu0 %v1159
    %1196 = vmatprep.subr.mxu0 0.0
    %1197 = vmatpush1.msra.mxu0 %v1160
    %1198 = vmatprep.subr.mxu0 0.0
    %1199 = vmatpush1.msra.mxu0 0.0
    %1200 = vmatprep.subr.mxu0 0.0
    %1201 = vmatpush1.msra.mxu0 0.0
    %1202 = vmatprep.subr.mxu0 0.0
    %1203 = vmatpush1.msra.mxu0 0.0
    %1204 = vmatprep.subr.mxu0 0.0
    %1205 = vmatpush1.msra.mxu0 0.0
    %1206 = vmatprep.subr.mxu0 0.0
    %1207 = vmatpush1.msra.mxu0 0.0
    %1208 = vmatprep.subr.mxu0 0.0
    %1209 = vmatpush1.msra.mxu0 0.0
    %1210 = vmatprep.subr.mxu0 0.0
    %1211 = vmatpush1.msra.mxu0 0.0
    %1212 = vmatprep.subr.mxu0 0.0
    %1213 = vmatpush1.msra.mxu0 0.0
    %1214 = vmatprep.subr.mxu0 0.0
    %1215 = vmatpush1.msra.mxu0 0.0
    %1216 = vmatprep.subr.mxu0 0.0
    %1217 = vmatpush1.msra.mxu0 0.0
    %1218 = vmatprep.subr.mxu0 0.0
    %1219 = vmatpush1.msra.mxu0 0.0
    %1220 = vmatprep.subr.mxu0 0.0
    %1221 = vmatpush1.msra.mxu0 0.0
    %1222 = vmatprep.subr.mxu0 0.0
    %1223 = vmatpush1.msra.mxu0 0.0
    %1224 = vmatprep.subr.mxu0 0.0
    %1225 = vmatpush1.msra.mxu0 0.0
    %1226 = vmatprep.subr.mxu0 0.0
    %1227 = vmatpush1.msra.mxu0 0.0
    %1228 = vmatprep.subr.mxu0 0.0
    %1229 = vmatpush1.msra.mxu0 0.0
    %1230 = vmatprep.mubr.f32.mxu0 0.0
    %1231 = vmatmul.mubr.f32.gmra.mrb[0].mxu0 %v1143
    %v1232 = vpop.f32.mrb[0].mxu0
    %v1233 = vadd.f32 %v1165, %v1232
    %v1234 = vpop.f32.mrb[0].mxu0
    %1235 = vmatprep.mubr.f32.mxu0 0.0
    %1236 = vmatmul.mubr.f32.gmra.mrb[0].mxu0 %v1144
    %v1237 = vpop.f32.mrb[0].mxu0
    %v1238 = vadd.f32 %v1165, %v1237
    %v1239 = vpop.f32.mrb[0].mxu0
    %1240 = vdwg.mxu0
    %vm1241 = vcmp.gt.f32.partialorder %v1233, 0.0
    %vm1242 = vcmp.gt.f32.partialorder %v1238, 0.0
    %v1243 = vmul.f32 %v1233, 0.02
    %v1244 = vmul.f32 %v1238, 0.02
    %v1245 = vsel %vm1241, %v1233, %v1243
    %v1246 = vsel %vm1242, %v1238, %v1244
    %v1247 = vld [vmem:[#allocation2 + $0x2c0] sm:$0xff]
    %v1248 = vld [vmem:[#allocation2 + $0x2c8] sm:$0xff]
    %v1249 = vld [vmem:[#allocation2 + $0x2d0] sm:$0xff]
    %v1250 = vld [vmem:[#allocation2 + $0x2d8] sm:$0xff]
    %v1251 = vld [vmem:[#allocation2 + $0x2e0] sm:$0xff]
    %v1252 = vld [vmem:[#allocation2 + $0x2e8] sm:$0xff]
    %v1253 = vld [vmem:[#allocation2 + $0x2f0] sm:$0xff]
    %v1254 = vld [vmem:[#allocation2 + $0x2f8] sm:$0xff]
    %v1255 = vld [vmem:[#allocation2 + $0x300] sm:$0x1]
    %v1256 = vlaneseq
    %v1257 = vshrl.u32 %v1256, 7
    %v1258 = vsub.s32 0, %v1257
    %v1259 = vrot.slane %v1255, %v1258
    %v1261 = vsel %vm519, %v1245, 0
    %v1264 = vsel %vm519, %v1246, 0
    %1266 = vmatprep.subr.mxu0 0.0
    %1267 = vmatpush1.msra.mxu0 %v1247
    %1268 = vmatprep.subr.mxu0 0.0
    %1269 = vmatpush1.msra.mxu0 %v1248
    %1270 = vmatprep.subr.mxu0 0.0
    %1271 = vmatpush1.msra.mxu0 %v1249
    %1272 = vmatprep.subr.mxu0 0.0
    %1273 = vmatpush1.msra.mxu0 %v1250
    %1274 = vmatprep.subr.mxu0 0.0
    %1275 = vmatpush1.msra.mxu0 %v1251
    %1276 = vmatprep.subr.mxu0 0.0
    %1277 = vmatpush1.msra.mxu0 %v1252
    %1278 = vmatprep.subr.mxu0 0.0
    %1279 = vmatpush1.msra.mxu0 %v1253
    %1280 = vmatprep.subr.mxu0 0.0
    %1281 = vmatpush1.msra.mxu0 %v1254
    %1282 = vmatprep.subr.mxu0 0.0
    %1283 = vmatpush1.msra.mxu0 0.0
    %1284 = vmatprep.subr.mxu0 0.0
    %1285 = vmatpush1.msra.mxu0 0.0
    %1286 = vmatprep.subr.mxu0 0.0
    %1287 = vmatpush1.msra.mxu0 0.0
    %1288 = vmatprep.subr.mxu0 0.0
    %1289 = vmatpush1.msra.mxu0 0.0
    %1290 = vmatprep.subr.mxu0 0.0
    %1291 = vmatpush1.msra.mxu0 0.0
    %1292 = vmatprep.subr.mxu0 0.0
    %1293 = vmatpush1.msra.mxu0 0.0
    %1294 = vmatprep.subr.mxu0 0.0
    %1295 = vmatpush1.msra.mxu0 0.0
    %1296 = vmatprep.subr.mxu0 0.0
    %1297 = vmatpush1.msra.mxu0 0.0
    %1298 = vmatprep.subr.mxu0 0.0
    %1299 = vmatpush1.msra.mxu0 0.0
    %1300 = vmatprep.subr.mxu0 0.0
    %1301 = vmatpush1.msra.mxu0 0.0
    %1302 = vmatprep.subr.mxu0 0.0
    %1303 = vmatpush1.msra.mxu0 0.0
    %1304 = vmatprep.subr.mxu0 0.0
    %1305 = vmatpush1.msra.mxu0 0.0
    %1306 = vmatprep.subr.mxu0 0.0
    %1307 = vmatpush1.msra.mxu0 0.0
    %1308 = vmatprep.subr.mxu0 0.0
    %1309 = vmatpush1.msra.mxu0 0.0
    %1310 = vmatprep.subr.mxu0 0.0
    %1311 = vmatpush1.msra.mxu0 0.0
    %1312 = vmatprep.subr.mxu0 0.0
    %1313 = vmatpush1.msra.mxu0 0.0
    %1314 = vmatprep.subr.mxu0 0.0
    %1315 = vmatpush1.msra.mxu0 0.0
    %1316 = vmatprep.subr.mxu0 0.0
    %1317 = vmatpush1.msra.mxu0 0.0
    %1318 = vmatprep.subr.mxu0 0.0
    %1319 = vmatpush1.msra.mxu0 0.0
    %1320 = vmatprep.subr.mxu0 0.0
    %1321 = vmatpush1.msra.mxu0 0.0
    %1322 = vmatprep.subr.mxu0 0.0
    %1323 = vmatpush1.msra.mxu0 0.0
    %1324 = vmatprep.subr.mxu0 0.0
    %1325 = vmatpush1.msra.mxu0 0.0
    %1326 = vmatprep.subr.mxu0 0.0
    %1327 = vmatpush1.msra.mxu0 0.0
    %1328 = vmatprep.subr.mxu0 0.0
    %1329 = vmatpush1.msra.mxu0 0.0
    %1330 = vmatprep.mubr.f32.mxu0 0.0
    %1331 = vmatmul.mubr.f32.gmra.mrb[0].mxu0 %v1261
    %v1332 = vpop.f32.mrb[0].mxu0
    %v1333 = vadd.f32 %v1259, %v1332
    %v1334 = vpop.f32.mrb[0].mxu0
    %1335 = vmatprep.mubr.f32.mxu0 0.0
    %1336 = vmatmul.mubr.f32.gmra.mrb[0].mxu0 %v1264
    %v1337 = vpop.f32.mrb[0].mxu0
    %v1338 = vadd.f32 %v1259, %v1337
    %v1339 = vpop.f32.mrb[0].mxu0
    %1340 = vdwg.mxu0
    %v1341 = vtanh.pop %v1333
    %v1342 = vtanh.pop %v1338
    %v1344 = vrot.slane %v1341, 2
    %1345 = vrot.lane.b32.xlu0 %v1344, 32
    %v1346 = vpop.permute.xlu0 %1345
    %v1348 = vrot.slane %v1341, 4
    %1349 = vrot.lane.b32.xlu0 %v1348, 64
    %v1350 = vpop.permute.xlu0 %1349
    %v1352 = vrot.slane %v1341, 6
    %1353 = vrot.lane.b32.xlu0 %v1352, 96
    %v1354 = vpop.permute.xlu0 %1353
    %v1357 = vrot.slane %v1342, 2
    %1358 = vrot.lane.b32.xlu0 %v1357, 32
    %v1359 = vpop.permute.xlu0 %1358
    %v1361 = vrot.slane %v1342, 4
    %1362 = vrot.lane.b32.xlu0 %v1361, 64
    %v1363 = vpop.permute.xlu0 %1362
    %v1365 = vrot.slane %v1342, 6
    %1366 = vrot.lane.b32.xlu0 %v1365, 96
    %v1367 = vpop.permute.xlu0 %1366
    %v1369 = vsel %vm516, %v1341, %v1346
    %v1370 = vsel %vm519, %v1369, %v1350
    %v1371 = vsel %vm599, %v1370, %v1354
    %v1372 = vsel %vm516, %v1342, %v1359
    %v1373 = vsel %vm519, %v1372, %v1363
    %v1374 = vsel %vm599, %v1373, %v1367
    %v1375 = vld [vmem:[#allocation2 + $0x308] sm:$0xff]
    %v1376 = vld [vmem:[#allocation2 + $0x310] sm:$0xff]
    %v1377 = vld [vmem:[#allocation2 + $0x318] sm:$0xff]
    %v1378 = vld [vmem:[#allocation2 + $0x320] sm:$0xff]
    %v1379 = vld [vmem:[#allocation2 + $0x328] sm:$0xff]
    %v1380 = vld [vmem:[#allocation2 + $0x330] sm:$0xff]
    %v1381 = vld [vmem:[#allocation2 + $0x338] sm:$0xff]
    %v1382 = vld [vmem:[#allocation2 + $0x340] sm:$0xff]
    %v1383 = vld [vmem:[#allocation2 + $0x348] sm:$0xff]
    %v1384 = vld [vmem:[#allocation2 + $0x350] sm:$0xff]
    %v1385 = vld [vmem:[#allocation2 + $0x358] sm:$0xff]
    %v1386 = vld [vmem:[#allocation2 + $0x360] sm:$0xff]
    %v1387 = vld [vmem:[#allocation2 + $0x368] sm:$0xff]
    %v1388 = vld [vmem:[#allocation2 + $0x370] sm:$0xff]
    %v1389 = vld [vmem:[#allocation2 + $0x378] sm:$0xff]
    %v1390 = vld [vmem:[#allocation2 + $0x380] sm:$0xff]
    %v1391 = vld [vmem:[#allocation2 + $0x388] sm:$0xff]
    %v1392 = vld [vmem:[#allocation2 + $0x390] sm:$0xff]
    %v1393 = vld [vmem:[#allocation2 + $0x398] sm:$0xff]
    %v1394 = vld [vmem:[#allocation2 + $0x3a0] sm:$0xff]
    %v1395 = vld [vmem:[#allocation2 + $0x3a8] sm:$0xff]
    %v1396 = vld [vmem:[#allocation2 + $0x3b0] sm:$0xff]
    %v1397 = vld [vmem:[#allocation2 + $0x3b8] sm:$0xff]
    %v1398 = vld [vmem:[#allocation2 + $0x3c0] sm:$0xff]
    %v1399 = vld [vmem:[#allocation2 + $0x3c8] sm:$0xff]
    %v1400 = vld [vmem:[#allocation2 + $0x3d0] sm:$0xff]
    %v1401 = vld [vmem:[#allocation2 + $0x3d8] sm:$0xff]
    %v1402 = vld [vmem:[#allocation2 + $0x3e0] sm:$0xff]
    %v1403 = vld [vmem:[#allocation2 + $0x3e8] sm:$0xff]
    %v1404 = vld [vmem:[#allocation2 + $0x3f0] sm:$0xff]
    %v1405 = vld [vmem:[#allocation2 + $0x3f8] sm:$0xff]
    %v1406 = vld [vmem:[#allocation2 + $0x400] sm:$0xff]
    %v1407 = vld [vmem:[#allocation2 + $0x408] sm:$0x1]
    %v1408 = vlaneseq
    %v1409 = vshrl.u32 %v1408, 7
    %v1410 = vsub.s32 0, %v1409
    %v1411 = vrot.slane %v1407, %v1410
    %1412 = vmatprep.subr.mxu0 0.0
    %1413 = vmatpush1.msra.mxu0 %v1375
    %1414 = vmatprep.subr.mxu0 0.0
    %1415 = vmatpush1.msra.mxu0 %v1376
    %1416 = vmatprep.subr.mxu0 0.0
    %1417 = vmatpush1.msra.mxu0 %v1377
    %1418 = vmatprep.subr.mxu0 0.0
    %1419 = vmatpush1.msra.mxu0 %v1378
    %1420 = vmatprep.subr.mxu0 0.0
    %1421 = vmatpush1.msra.mxu0 %v1379
    %1422 = vmatprep.subr.mxu0 0.0
    %1423 = vmatpush1.msra.mxu0 %v1380
    %1424 = vmatprep.subr.mxu0 0.0
    %1425 = vmatpush1.msra.mxu0 %v1381
    %1426 = vmatprep.subr.mxu0 0.0
    %1427 = vmatpush1.msra.mxu0 %v1382
    %1428 = vmatprep.subr.mxu0 0.0
    %1429 = vmatpush1.msra.mxu0 %v1383
    %1430 = vmatprep.subr.mxu0 0.0
    %1431 = vmatpush1.msra.mxu0 %v1384
    %1432 = vmatprep.subr.mxu0 0.0
    %1433 = vmatpush1.msra.mxu0 %v1385
    %1434 = vmatprep.subr.mxu0 0.0
    %1435 = vmatpush1.msra.mxu0 %v1386
    %1436 = vmatprep.subr.mxu0 0.0
    %1437 = vmatpush1.msra.mxu0 %v1387
    %1438 = vmatprep.subr.mxu0 0.0
    %1439 = vmatpush1.msra.mxu0 %v1388
    %1440 = vmatprep.subr.mxu0 0.0
    %1441 = vmatpush1.msra.mxu0 %v1389
    %1442 = vmatprep.subr.mxu0 0.0
    %1443 = vmatpush1.msra.mxu0 %v1390
    %1444 = vmatprep.subr.mxu0 0.0
    %1445 = vmatpush1.msra.mxu0 %v1391
    %1446 = vmatprep.subr.mxu0 0.0
    %1447 = vmatpush1.msra.mxu0 %v1392
    %1448 = vmatprep.subr.mxu0 0.0
    %1449 = vmatpush1.msra.mxu0 %v1393
    %1450 = vmatprep.subr.mxu0 0.0
    %1451 = vmatpush1.msra.mxu0 %v1394
    %1452 = vmatprep.subr.mxu0 0.0
    %1453 = vmatpush1.msra.mxu0 %v1395
    %1454 = vmatprep.subr.mxu0 0.0
    %1455 = vmatpush1.msra.mxu0 %v1396
    %1456 = vmatprep.subr.mxu0 0.0
    %1457 = vmatpush1.msra.mxu0 %v1397
    %1458 = vmatprep.subr.mxu0 0.0
    %1459 = vmatpush1.msra.mxu0 %v1398
    %1460 = vmatprep.subr.mxu0 0.0
    %1461 = vmatpush1.msra.mxu0 %v1399
    %1462 = vmatprep.subr.mxu0 0.0
    %1463 = vmatpush1.msra.mxu0 %v1400
    %1464 = vmatprep.subr.mxu0 0.0
    %1465 = vmatpush1.msra.mxu0 %v1401
    %1466 = vmatprep.subr.mxu0 0.0
    %1467 = vmatpush1.msra.mxu0 %v1402
    %1468 = vmatprep.subr.mxu0 0.0
    %1469 = vmatpush1.msra.mxu0 %v1403
    %1470 = vmatprep.subr.mxu0 0.0
    %1471 = vmatpush1.msra.mxu0 %v1404
    %1472 = vmatprep.subr.mxu0 0.0
    %1473 = vmatpush1.msra.mxu0 %v1405
    %1474 = vmatprep.subr.mxu0 0.0
    %1475 = vmatpush1.msra.mxu0 %v1406
    %1476 = vmatprep.mubr.f32.mxu0 %v1374
    %1477 = vmatmul.mubr.f32.gmra.mrb[0].mxu0 %v1371
    %v1478 = vpop.f32.mrb[0].mxu0
    %v1479 = vadd.f32 %v1411, %v1478
    %v1480 = vpop.f32.mrb[0].mxu0
    %1481 = vdwg.mxu0
    %vm1482 = vcmp.gt.f32.partialorder %v1479, 0.0
    %v1483 = vmul.f32 %v1479, 0.02
    %v1484 = vsel %vm1482, %v1479, %v1483
    %v1485 = vld [vmem:[#allocation2 + $0x410] sm:$0xff]
    %v1486 = vld [vmem:[#allocation2 + $0x418] sm:$0xff]
    %v1487 = vld [vmem:[#allocation2 + $0x420] sm:$0xff]
    %v1488 = vld [vmem:[#allocation2 + $0x428] sm:$0xff]
    %v1489 = vld [vmem:[#allocation2 + $0x430] sm:$0xff]
    %v1490 = vld [vmem:[#allocation2 + $0x438] sm:$0xff]
    %v1491 = vld [vmem:[#allocation2 + $0x440] sm:$0xff]
    %v1492 = vld [vmem:[#allocation2 + $0x448] sm:$0xff]
    %v1493 = vld [vmem:[#allocation2 + $0x450] sm:$0xff]
    %v1494 = vld [vmem:[#allocation2 + $0x458] sm:$0xff]
    %v1495 = vld [vmem:[#allocation2 + $0x460] sm:$0xff]
    %v1496 = vld [vmem:[#allocation2 + $0x468] sm:$0xff]
    %v1497 = vld [vmem:[#allocation2 + $0x470] sm:$0xff]
    %v1498 = vld [vmem:[#allocation2 + $0x478] sm:$0xff]
    %v1499 = vld [vmem:[#allocation2 + $0x480] sm:$0xff]
    %v1500 = vld [vmem:[#allocation2 + $0x488] sm:$0xff]
    %v1501 = vld [vmem:[#allocation2 + $0x490] sm:$0x1]
    %v1502 = vlaneseq
    %v1503 = vshrl.u32 %v1502, 7
    %v1504 = vsub.s32 0, %v1503
    %v1505 = vrot.slane %v1501, %v1504
    %1506 = vmatprep.subr.mxu0 0.0
    %1507 = vmatpush1.msra.mxu0 %v1485
    %1508 = vmatprep.subr.mxu0 0.0
    %1509 = vmatpush1.msra.mxu0 %v1486
    %1510 = vmatprep.subr.mxu0 0.0
    %1511 = vmatpush1.msra.mxu0 %v1487
    %1512 = vmatprep.subr.mxu0 0.0
    %1513 = vmatpush1.msra.mxu0 %v1488
    %1514 = vmatprep.subr.mxu0 0.0
    %1515 = vmatpush1.msra.mxu0 %v1489
    %1516 = vmatprep.subr.mxu0 0.0
    %1517 = vmatpush1.msra.mxu0 %v1490
    %1518 = vmatprep.subr.mxu0 0.0
    %1519 = vmatpush1.msra.mxu0 %v1491
    %1520 = vmatprep.subr.mxu0 0.0
    %1521 = vmatpush1.msra.mxu0 %v1492
    %1522 = vmatprep.subr.mxu0 0.0
    %1523 = vmatpush1.msra.mxu0 %v1493
    %1524 = vmatprep.subr.mxu0 0.0
    %1525 = vmatpush1.msra.mxu0 %v1494
    %1526 = vmatprep.subr.mxu0 0.0
    %1527 = vmatpush1.msra.mxu0 %v1495
    %1528 = vmatprep.subr.mxu0 0.0
    %1529 = vmatpush1.msra.mxu0 %v1496
    %1530 = vmatprep.subr.mxu0 0.0
    %1531 = vmatpush1.msra.mxu0 %v1497
    %1532 = vmatprep.subr.mxu0 0.0
    %1533 = vmatpush1.msra.mxu0 %v1498
    %1534 = vmatprep.subr.mxu0 0.0
    %1535 = vmatpush1.msra.mxu0 %v1499
    %1536 = vmatprep.subr.mxu0 0.0
    %1537 = vmatpush1.msra.mxu0 %v1500
    %1538 = vmatprep.subr.mxu0 0.0
    %1539 = vmatpush1.msra.mxu0 0.0
    %1540 = vmatprep.subr.mxu0 0.0
    %1541 = vmatpush1.msra.mxu0 0.0
    %1542 = vmatprep.subr.mxu0 0.0
    %1543 = vmatpush1.msra.mxu0 0.0
    %1544 = vmatprep.subr.mxu0 0.0
    %1545 = vmatpush1.msra.mxu0 0.0
    %1546 = vmatprep.subr.mxu0 0.0
    %1547 = vmatpush1.msra.mxu0 0.0
    %1548 = vmatprep.subr.mxu0 0.0
    %1549 = vmatpush1.msra.mxu0 0.0
    %1550 = vmatprep.subr.mxu0 0.0
    %1551 = vmatpush1.msra.mxu0 0.0
    %1552 = vmatprep.subr.mxu0 0.0
    %1553 = vmatpush1.msra.mxu0 0.0
    %1554 = vmatprep.subr.mxu0 0.0
    %1555 = vmatpush1.msra.mxu0 0.0
    %1556 = vmatprep.subr.mxu0 0.0
    %1557 = vmatpush1.msra.mxu0 0.0
    %1558 = vmatprep.subr.mxu0 0.0
    %1559 = vmatpush1.msra.mxu0 0.0
    %1560 = vmatprep.subr.mxu0 0.0
    %1561 = vmatpush1.msra.mxu0 0.0
    %1562 = vmatprep.subr.mxu0 0.0
    %1563 = vmatpush1.msra.mxu0 0.0
    %1564 = vmatprep.subr.mxu0 0.0
    %1565 = vmatpush1.msra.mxu0 0.0
    %1566 = vmatprep.subr.mxu0 0.0
    %1567 = vmatpush1.msra.mxu0 0.0
    %1568 = vmatprep.subr.mxu0 0.0
    %1569 = vmatpush1.msra.mxu0 0.0
    %1570 = vmatprep.mubr.f32.mxu0 0.0
    %1571 = vmatmul.mubr.f32.gmra.mrb[0].mxu0 %v1484
    %v1572 = vpop.f32.mrb[0].mxu0
    %v1573 = vadd.f32 %v1505, %v1572
    %v1574 = vpop.f32.mrb[0].mxu0
    %1575 = vdwg.mxu0
    %vm1576 = vcmp.gt.f32.partialorder %v1573, 0.0
    %v1577 = vmul.f32 %v1573, 0.02
    %v1578 = vsel %vm1576, %v1573, %v1577
    %v1579 = vld [vmem:[#allocation2 + $0x498] sm:$0xff]
    %v1580 = vld [vmem:[#allocation2 + $0x4a0] sm:$0xff]
    %v1581 = vld [vmem:[#allocation2 + $0x4a8] sm:$0xff]
    %v1582 = vld [vmem:[#allocation2 + $0x4b0] sm:$0xff]
    %v1583 = vld [vmem:[#allocation2 + $0x4b8] sm:$0xff]
    %v1584 = vld [vmem:[#allocation2 + $0x4c0] sm:$0xff]
    %v1585 = vld [vmem:[#allocation2 + $0x4c8] sm:$0xff]
    %v1586 = vld [vmem:[#allocation2 + $0x4d0] sm:$0xff]
    %v1587 = vld [vmem:[#allocation2 + $0x4d8] sm:$0x1]
    %v1588 = vlaneseq
    %v1589 = vshrl.u32 %v1588, 7
    %v1590 = vsub.s32 0, %v1589
    %v1591 = vrot.slane %v1587, %v1590
    %v1593 = vsel %vm519, %v1578, 0
    %1595 = vmatprep.subr.mxu0 0.0
    %1596 = vmatpush1.msra.mxu0 %v1579
    %1597 = vmatprep.subr.mxu0 0.0
    %1598 = vmatpush1.msra.mxu0 %v1580
    %1599 = vmatprep.subr.mxu0 0.0
    %1600 = vmatpush1.msra.mxu0 %v1581
    %1601 = vmatprep.subr.mxu0 0.0
    %1602 = vmatpush1.msra.mxu0 %v1582
    %1603 = vmatprep.subr.mxu0 0.0
    %1604 = vmatpush1.msra.mxu0 %v1583
    %1605 = vmatprep.subr.mxu0 0.0
    %1606 = vmatpush1.msra.mxu0 %v1584
    %1607 = vmatprep.subr.mxu0 0.0
    %1608 = vmatpush1.msra.mxu0 %v1585
    %1609 = vmatprep.subr.mxu0 0.0
    %1610 = vmatpush1.msra.mxu0 %v1586
    %1611 = vmatprep.subr.mxu0 0.0
    %1612 = vmatpush1.msra.mxu0 0.0
    %1613 = vmatprep.subr.mxu0 0.0
    %1614 = vmatpush1.msra.mxu0 0.0
    %1615 = vmatprep.subr.mxu0 0.0
    %1616 = vmatpush1.msra.mxu0 0.0
    %1617 = vmatprep.subr.mxu0 0.0
    %1618 = vmatpush1.msra.mxu0 0.0
    %1619 = vmatprep.subr.mxu0 0.0
    %1620 = vmatpush1.msra.mxu0 0.0
    %1621 = vmatprep.subr.mxu0 0.0
    %1622 = vmatpush1.msra.mxu0 0.0
    %1623 = vmatprep.subr.mxu0 0.0
    %1624 = vmatpush1.msra.mxu0 0.0
    %1625 = vmatprep.subr.mxu0 0.0
    %1626 = vmatpush1.msra.mxu0 0.0
    %1627 = vmatprep.subr.mxu0 0.0
    %1628 = vmatpush1.msra.mxu0 0.0
    %1629 = vmatprep.subr.mxu0 0.0
    %1630 = vmatpush1.msra.mxu0 0.0
    %1631 = vmatprep.subr.mxu0 0.0
    %1632 = vmatpush1.msra.mxu0 0.0
    %1633 = vmatprep.subr.mxu0 0.0
    %1634 = vmatpush1.msra.mxu0 0.0
    %1635 = vmatprep.subr.mxu0 0.0
    %1636 = vmatpush1.msra.mxu0 0.0
    %1637 = vmatprep.subr.mxu0 0.0
    %1638 = vmatpush1.msra.mxu0 0.0
    %1639 = vmatprep.subr.mxu0 0.0
    %1640 = vmatpush1.msra.mxu0 0.0
    %1641 = vmatprep.subr.mxu0 0.0
    %1642 = vmatpush1.msra.mxu0 0.0
    %1643 = vmatprep.subr.mxu0 0.0
    %1644 = vmatpush1.msra.mxu0 0.0
    %1645 = vmatprep.subr.mxu0 0.0
    %1646 = vmatpush1.msra.mxu0 0.0
    %1647 = vmatprep.subr.mxu0 0.0
    %1648 = vmatpush1.msra.mxu0 0.0
    %1649 = vmatprep.subr.mxu0 0.0
    %1650 = vmatpush1.msra.mxu0 0.0
    %1651 = vmatprep.subr.mxu0 0.0
    %1652 = vmatpush1.msra.mxu0 0.0
    %1653 = vmatprep.subr.mxu0 0.0
    %1654 = vmatpush1.msra.mxu0 0.0
    %1655 = vmatprep.subr.mxu0 0.0
    %1656 = vmatpush1.msra.mxu0 0.0
    %1657 = vmatprep.subr.mxu0 0.0
    %1658 = vmatpush1.msra.mxu0 0.0
    %1659 = vmatprep.mubr.f32.mxu0 0.0
    %1660 = vmatmul.mubr.f32.gmra.mrb[0].mxu0 %v1593
    %v1661 = vpop.f32.mrb[0].mxu0
    %v1662 = vadd.f32 %v1591, %v1661
    %v1663 = vpop.f32.mrb[0].mxu0
    %1664 = vdwg.mxu0
    %vm1665 = vcmp.gt.f32.partialorder %v1662, 0.0
    %v1666 = vmul.f32 %v1662, 0.02
    %v1667 = vsel %vm1665, %v1662, %v1666
    %v1668 = vld [vmem:[#allocation2 + $0x4e0] sm:$0xff]
    %v1669 = vld [vmem:[#allocation2 + $0x4e8] sm:$0xff]
    %v1670 = vld [vmem:[#allocation2 + $0x4f0] sm:$0xff]
    %v1671 = vld [vmem:[#allocation2 + $0x4f8] sm:$0xff]
    %v1672 = vld [vmem:[#allocation2 + $0x500] sm:$0x1]
    %v1673 = vlaneseq
    %v1674 = vshrl.u32 %v1673, 7
    %v1675 = vsub.s32 0, %v1674
    %v1676 = vrot.slane %v1672, %v1675
    %v1678 = vsel %vm516, %v1667, 0
    %1680 = vmatprep.subr.mxu0 0.0
    %1681 = vmatpush1.msra.mxu0 %v1668
    %1682 = vmatprep.subr.mxu0 0.0
    %1683 = vmatpush1.msra.mxu0 %v1669
    %1684 = vmatprep.subr.mxu0 0.0
    %1685 = vmatpush1.msra.mxu0 %v1670
    %1686 = vmatprep.subr.mxu0 0.0
    %1687 = vmatpush1.msra.mxu0 %v1671
    %1688 = vmatprep.subr.mxu0 0.0
    %1689 = vmatpush1.msra.mxu0 0.0
    %1690 = vmatprep.subr.mxu0 0.0
    %1691 = vmatpush1.msra.mxu0 0.0
    %1692 = vmatprep.subr.mxu0 0.0
    %1693 = vmatpush1.msra.mxu0 0.0
    %1694 = vmatprep.subr.mxu0 0.0
    %1695 = vmatpush1.msra.mxu0 0.0
    %1696 = vmatprep.subr.mxu0 0.0
    %1697 = vmatpush1.msra.mxu0 0.0
    %1698 = vmatprep.subr.mxu0 0.0
    %1699 = vmatpush1.msra.mxu0 0.0
    %1700 = vmatprep.subr.mxu0 0.0
    %1701 = vmatpush1.msra.mxu0 0.0
    %1702 = vmatprep.subr.mxu0 0.0
    %1703 = vmatpush1.msra.mxu0 0.0
    %1704 = vmatprep.subr.mxu0 0.0
    %1705 = vmatpush1.msra.mxu0 0.0
    %1706 = vmatprep.subr.mxu0 0.0
    %1707 = vmatpush1.msra.mxu0 0.0
    %1708 = vmatprep.subr.mxu0 0.0
    %1709 = vmatpush1.msra.mxu0 0.0
    %1710 = vmatprep.subr.mxu0 0.0
    %1711 = vmatpush1.msra.mxu0 0.0
    %1712 = vmatprep.subr.mxu0 0.0
    %1713 = vmatpush1.msra.mxu0 0.0
    %1714 = vmatprep.subr.mxu0 0.0
    %1715 = vmatpush1.msra.mxu0 0.0
    %1716 = vmatprep.subr.mxu0 0.0
    %1717 = vmatpush1.msra.mxu0 0.0
    %1718 = vmatprep.subr.mxu0 0.0
    %1719 = vmatpush1.msra.mxu0 0.0
    %1720 = vmatprep.subr.mxu0 0.0
    %1721 = vmatpush1.msra.mxu0 0.0
    %1722 = vmatprep.subr.mxu0 0.0
    %1723 = vmatpush1.msra.mxu0 0.0
    %1724 = vmatprep.subr.mxu0 0.0
    %1725 = vmatpush1.msra.mxu0 0.0
    %1726 = vmatprep.subr.mxu0 0.0
    %1727 = vmatpush1.msra.mxu0 0.0
    %1728 = vmatprep.subr.mxu0 0.0
    %1729 = vmatpush1.msra.mxu0 0.0
    %1730 = vmatprep.subr.mxu0 0.0
    %1731 = vmatpush1.msra.mxu0 0.0
    %1732 = vmatprep.subr.mxu0 0.0
    %1733 = vmatpush1.msra.mxu0 0.0
    %1734 = vmatprep.subr.mxu0 0.0
    %1735 = vmatpush1.msra.mxu0 0.0
    %1736 = vmatprep.subr.mxu0 0.0
    %1737 = vmatpush1.msra.mxu0 0.0
    %1738 = vmatprep.subr.mxu0 0.0
    %1739 = vmatpush1.msra.mxu0 0.0
    %1740 = vmatprep.subr.mxu0 0.0
    %1741 = vmatpush1.msra.mxu0 0.0
    %1742 = vmatprep.subr.mxu0 0.0
    %1743 = vmatpush1.msra.mxu0 0.0
    %1744 = vmatprep.mubr.f32.mxu0 0.0
    %1745 = vmatmul.mubr.f32.gmra.mrb[0].mxu0 %v1678
    %v1746 = vpop.f32.mrb[0].mxu0
    %v1747 = vadd.f32 %v1676, %v1746
    %v1748 = vpop.f32.mrb[0].mxu0
    %1749 = vdwg.mxu0
    %vm1750 = vcmp.gt.f32.partialorder %v1747, 0.0
    %v1751 = vmul.f32 %v1747, 0.02
    %v1752 = vsel %vm1750, %v1747, %v1751
    %v1753 = vld [vmem:[#allocation2 + $0x508] sm:$0xff]
    %v1754 = vld [vmem:[#allocation2 + $0x510] sm:$0xff]
    %v1755 = vld [vmem:[#allocation2 + $0x518] sm:$0x1]
    %v1756 = vlaneseq
    %v1757 = vshrl.u32 %v1756, 7
    %v1758 = vsub.s32 0, %v1757
    %v1759 = vrot.slane %v1755, %v1758
    %vm1760 = vcmask 130048
    %v1762 = vsel %vm1760, %v1752, 0
    %1764 = vmatprep.subr.mxu0 0.0
    %1765 = vmatpush1.msra.mxu0 %v1753
    %1766 = vmatprep.subr.mxu0 0.0
    %1767 = vmatpush1.msra.mxu0 %v1754
    %1768 = vmatprep.subr.mxu0 0.0
    %1769 = vmatpush1.msra.mxu0 0.0
    %1770 = vmatprep.subr.mxu0 0.0
    %1771 = vmatpush1.msra.mxu0 0.0
    %1772 = vmatprep.subr.mxu0 0.0
    %1773 = vmatpush1.msra.mxu0 0.0
    %1774 = vmatprep.subr.mxu0 0.0
    %1775 = vmatpush1.msra.mxu0 0.0
    %1776 = vmatprep.subr.mxu0 0.0
    %1777 = vmatpush1.msra.mxu0 0.0
    %1778 = vmatprep.subr.mxu0 0.0
    %1779 = vmatpush1.msra.mxu0 0.0
    %1780 = vmatprep.subr.mxu0 0.0
    %1781 = vmatpush1.msra.mxu0 0.0
    %1782 = vmatprep.subr.mxu0 0.0
    %1783 = vmatpush1.msra.mxu0 0.0
    %1784 = vmatprep.subr.mxu0 0.0
    %1785 = vmatpush1.msra.mxu0 0.0
    %1786 = vmatprep.subr.mxu0 0.0
    %1787 = vmatpush1.msra.mxu0 0.0
    %1788 = vmatprep.subr.mxu0 0.0
    %1789 = vmatpush1.msra.mxu0 0.0
    %1790 = vmatprep.subr.mxu0 0.0
    %1791 = vmatpush1.msra.mxu0 0.0
    %1792 = vmatprep.subr.mxu0 0.0
    %1793 = vmatpush1.msra.mxu0 0.0
    %1794 = vmatprep.subr.mxu0 0.0
    %1795 = vmatpush1.msra.mxu0 0.0
    %1796 = vmatprep.subr.mxu0 0.0
    %1797 = vmatpush1.msra.mxu0 0.0
    %1798 = vmatprep.subr.mxu0 0.0
    %1799 = vmatpush1.msra.mxu0 0.0
    %1800 = vmatprep.subr.mxu0 0.0
    %1801 = vmatpush1.msra.mxu0 0.0
    %1802 = vmatprep.subr.mxu0 0.0
    %1803 = vmatpush1.msra.mxu0 0.0
    %1804 = vmatprep.subr.mxu0 0.0
    %1805 = vmatpush1.msra.mxu0 0.0
    %1806 = vmatprep.subr.mxu0 0.0
    %1807 = vmatpush1.msra.mxu0 0.0
    %1808 = vmatprep.subr.mxu0 0.0
    %1809 = vmatpush1.msra.mxu0 0.0
    %1810 = vmatprep.subr.mxu0 0.0
    %1811 = vmatpush1.msra.mxu0 0.0
    %1812 = vmatprep.subr.mxu0 0.0
    %1813 = vmatpush1.msra.mxu0 0.0
    %1814 = vmatprep.subr.mxu0 0.0
    %1815 = vmatpush1.msra.mxu0 0.0
    %1816 = vmatprep.subr.mxu0 0.0
    %1817 = vmatpush1.msra.mxu0 0.0
    %1818 = vmatprep.subr.mxu0 0.0
    %1819 = vmatpush1.msra.mxu0 0.0
    %1820 = vmatprep.subr.mxu0 0.0
    %1821 = vmatpush1.msra.mxu0 0.0
    %1822 = vmatprep.subr.mxu0 0.0
    %1823 = vmatpush1.msra.mxu0 0.0
    %1824 = vmatprep.subr.mxu0 0.0
    %1825 = vmatpush1.msra.mxu0 0.0
    %1826 = vmatprep.subr.mxu0 0.0
    %1827 = vmatpush1.msra.mxu0 0.0
    %1828 = vmatprep.mubr.f32.mxu0 0.0
    %1829 = vmatmul.mubr.f32.gmra.mrb[0].mxu0 %v1762
    %v1830 = vpop.f32.mrb[0].mxu0
    %v1831 = vadd.f32 %v1759, %v1830
    %v1832 = vpop.f32.mrb[0].mxu0
    %1833 = vdwg.mxu0
    %vm1834 = vcmp.gt.f32.partialorder %v1831, 0.0
    %v1835 = vmul.f32 %v1831, 0.02
    %v1836 = vsel %vm1834, %v1831, %v1835
    %v1837 = vld [vmem:[#allocation2 + $0x520] sm:$0xff]
    %v1838 = vld [vmem:[#allocation2 + $0x528] sm:$0x1]
    %v1839 = vlaneseq
    %v1840 = vshrl.u32 %v1839, 7
    %v1841 = vsub.s32 0, %v1840
    %v1842 = vrot.slane %v1838, %v1841
    %vm1843 = vcmask 64512
    %v1845 = vsel %vm1843, %v1836, 0
    %1847 = vmatprep.subr.mxu0 0.0
    %1848 = vmatpush1.msra.mxu0 %v1837
    %1849 = vmatprep.subr.mxu0 0.0
    %1850 = vmatpush1.msra.mxu0 0.0
    %1851 = vmatprep.subr.mxu0 0.0
    %1852 = vmatpush1.msra.mxu0 0.0
    %1853 = vmatprep.subr.mxu0 0.0
    %1854 = vmatpush1.msra.mxu0 0.0
    %1855 = vmatprep.subr.mxu0 0.0
    %1856 = vmatpush1.msra.mxu0 0.0
    %1857 = vmatprep.subr.mxu0 0.0
    %1858 = vmatpush1.msra.mxu0 0.0
    %1859 = vmatprep.subr.mxu0 0.0
    %1860 = vmatpush1.msra.mxu0 0.0
    %1861 = vmatprep.subr.mxu0 0.0
    %1862 = vmatpush1.msra.mxu0 0.0
    %1863 = vmatprep.subr.mxu0 0.0
    %1864 = vmatpush1.msra.mxu0 0.0
    %1865 = vmatprep.subr.mxu0 0.0
    %1866 = vmatpush1.msra.mxu0 0.0
    %1867 = vmatprep.subr.mxu0 0.0
    %1868 = vmatpush1.msra.mxu0 0.0
    %1869 = vmatprep.subr.mxu0 0.0
    %1870 = vmatpush1.msra.mxu0 0.0
    %1871 = vmatprep.subr.mxu0 0.0
    %1872 = vmatpush1.msra.mxu0 0.0
    %1873 = vmatprep.subr.mxu0 0.0
    %1874 = vmatpush1.msra.mxu0 0.0
    %1875 = vmatprep.subr.mxu0 0.0
    %1876 = vmatpush1.msra.mxu0 0.0
    %1877 = vmatprep.subr.mxu0 0.0
    %1878 = vmatpush1.msra.mxu0 0.0
    %1879 = vmatprep.subr.mxu0 0.0
    %1880 = vmatpush1.msra.mxu0 0.0
    %1881 = vmatprep.subr.mxu0 0.0
    %1882 = vmatpush1.msra.mxu0 0.0
    %1883 = vmatprep.subr.mxu0 0.0
    %1884 = vmatpush1.msra.mxu0 0.0
    %1885 = vmatprep.subr.mxu0 0.0
    %1886 = vmatpush1.msra.mxu0 0.0
    %1887 = vmatprep.subr.mxu0 0.0
    %1888 = vmatpush1.msra.mxu0 0.0
    %1889 = vmatprep.subr.mxu0 0.0
    %1890 = vmatpush1.msra.mxu0 0.0
    %1891 = vmatprep.subr.mxu0 0.0
    %1892 = vmatpush1.msra.mxu0 0.0
    %1893 = vmatprep.subr.mxu0 0.0
    %1894 = vmatpush1.msra.mxu0 0.0
    %1895 = vmatprep.subr.mxu0 0.0
    %1896 = vmatpush1.msra.mxu0 0.0
    %1897 = vmatprep.subr.mxu0 0.0
    %1898 = vmatpush1.msra.mxu0 0.0
    %1899 = vmatprep.subr.mxu0 0.0
    %1900 = vmatpush1.msra.mxu0 0.0
    %1901 = vmatprep.subr.mxu0 0.0
    %1902 = vmatpush1.msra.mxu0 0.0
    %1903 = vmatprep.subr.mxu0 0.0
    %1904 = vmatpush1.msra.mxu0 0.0
    %1905 = vmatprep.subr.mxu0 0.0
    %1906 = vmatpush1.msra.mxu0 0.0
    %1907 = vmatprep.subr.mxu0 0.0
    %1908 = vmatpush1.msra.mxu0 0.0
    %1909 = vmatprep.subr.mxu0 0.0
    %1910 = vmatpush1.msra.mxu0 0.0
    %1911 = vmatprep.mubr.f32.mxu0 0.0
    %1912 = vmatmul.mubr.f32.gmra.mrb[0].mxu0 %v1845
    %v1913 = vpop.f32.mrb[0].mxu0
    %v1914 = vadd.f32 %v1842, %v1913
    %v1915 = vpop.f32.mrb[0].mxu0
    %1916 = vdwg.mxu0
    %vm1917 = vcmask 58368
    %v1918 = vsel %vm1917, %v1914, -inf
    %1919 = vmax.xlane.f32.xlu0 %v1918
    %v1920 = vpop.xlane.xlu0 %1919
    %v1921 = vsub.f32 %v1914, %v1920
    %v1922 = vmul.f32 %v1921, 1.442695
    %v1923 = vpow.pop %v1922
    %v1924 = vsel %vm1917, %v1923, 0.0
    %1925 = vadd.xlane.f32.xlu0 %v1924
    %v1926 = vpop.xlane.xlu0 %1925
    %v1927 = vrcp.pop %v1926
    %v1928 = vmul.f32 %v1923, %v1927
    %1930 = vset.pattern.permute.xlu0 0
    %1931 = vperm.xlu0 %1930, %v1928
    %v1932 = vpop.permute.xlu0 %1931
    %v1934 = vmul.f32 %v1932, %v1371
    %1935 = vset.pattern.permute.xlu0 1
    %1936 = vperm.xlu0 %1935, %v1928
    %v1937 = vpop.permute.xlu0 %1936
    %v1939 = vmul.f32 %v1937, %v1371
    %1941 = vrot.lane.b32.xlu0 %v1939, 96
    %v1942 = vpop.permute.xlu0 %1941
    %v1944 = vadd.f32 %v1934, %v1942
    %1945 = vset.pattern.permute.xlu0 2
    %1946 = vperm.xlu0 %1945, %v1928
    %v1947 = vpop.permute.xlu0 %1946
    %v1949 = vmul.f32 %v1947, %v1371
    %1951 = vrot.lane.b32.xlu0 %v1949, 64
    %v1952 = vpop.permute.xlu0 %1951
    %v1954 = vadd.f32 %v1944, %v1952
    %1955 = vset.pattern.permute.xlu0 3
    %1956 = vperm.xlu0 %1955, %v1928
    %v1957 = vpop.permute.xlu0 %1956
    %v1959 = vmul.f32 %v1957, %v1371
    %1961 = vrot.lane.b32.xlu0 %v1959, 32
    %v1962 = vpop.permute.xlu0 %1961
    %v1964 = vadd.f32 %v1954, %v1962
    %1965 = vset.pattern.permute.xlu0 4
    %1966 = vperm.xlu0 %1965, %v1928
    %v1967 = vpop.permute.xlu0 %1966
    %v1969 = vmul.f32 %v1967, %v1374
    %v1970 = vadd.f32 %v1964, %v1969
    %1971 = vset.pattern.permute.xlu0 5
    %1972 = vperm.xlu0 %1971, %v1928
    %v1973 = vpop.permute.xlu0 %1972
    %v1975 = vmul.f32 %v1973, %v1374
    %1977 = vrot.lane.b32.xlu0 %v1975, 96
    %v1978 = vpop.permute.xlu0 %1977
    %v1980 = vadd.f32 %v1970, %v1978
    %1981 = vset.pattern.permute.xlu0 6
    %1982 = vperm.xlu0 %1981, %v1928
    %v1983 = vpop.permute.xlu0 %1982
    %v1985 = vmul.f32 %v1983, %v1374
    %1987 = vrot.lane.b32.xlu0 %v1985, 64
    %v1988 = vpop.permute.xlu0 %1987
    %v1990 = vadd.f32 %v1980, %v1988
    %1991 = vset.pattern.permute.xlu0 7
    %1992 = vperm.xlu0 %1991, %v1928
    %v1993 = vpop.permute.xlu0 %1992
    %v1995 = vmul.f32 %v1993, %v1374
    %1997 = vrot.lane.b32.xlu0 %v1995, 32
    %v1998 = vpop.permute.xlu0 %1997
    %v2000 = vadd.f32 %v1990, %v1998
    %vm2001 = vcmask 254976
    %2002 = vst.msk [vmem:[#allocation6] sm:$0x3] %vm2001, %v2000
    %v2003 = vld [vmem:[#allocation2 + $0x530] sm:$0xff]
    %v2004 = vld [vmem:[#allocation2 + $0x538] sm:$0xff]
    %v2005 = vld [vmem:[#allocation2 + $0x540] sm:$0xff]
    %v2006 = vld [vmem:[#allocation2 + $0x548] sm:$0xff]
    %v2008 = vsel %vm516, %v2000, 0
    %2010 = vmatprep.subr.mxu0 0.0
    %2011 = vmatpush1.msra.mxu0 %v2003
    %2012 = vmatprep.subr.mxu0 0.0
    %2013 = vmatpush1.msra.mxu0 %v2004
    %2014 = vmatprep.subr.mxu0 0.0
    %2015 = vmatpush1.msra.mxu0 %v2005
    %2016 = vmatprep.subr.mxu0 0.0
    %2017 = vmatpush1.msra.mxu0 %v2006
    %2018 = vmatprep.subr.mxu0 0.0
    %2019 = vmatpush1.msra.mxu0 0.0
    %2020 = vmatprep.subr.mxu0 0.0
    %2021 = vmatpush1.msra.mxu0 0.0
    %2022 = vmatprep.subr.mxu0 0.0
    %2023 = vmatpush1.msra.mxu0 0.0
    %2024 = vmatprep.subr.mxu0 0.0
    %2025 = vmatpush1.msra.mxu0 0.0
    %2026 = vmatprep.subr.mxu0 0.0
    %2027 = vmatpush1.msra.mxu0 0.0
    %2028 = vmatprep.subr.mxu0 0.0
    %2029 = vmatpush1.msra.mxu0 0.0
    %2030 = vmatprep.subr.mxu0 0.0
    %2031 = vmatpush1.msra.mxu0 0.0
    %2032 = vmatprep.subr.mxu0 0.0
    %2033 = vmatpush1.msra.mxu0 0.0
    %2034 = vmatprep.subr.mxu0 0.0
    %2035 = vmatpush1.msra.mxu0 0.0
    %2036 = vmatprep.subr.mxu0 0.0
    %2037 = vmatpush1.msra.mxu0 0.0
    %2038 = vmatprep.subr.mxu0 0.0
    %2039 = vmatpush1.msra.mxu0 0.0
    %2040 = vmatprep.subr.mxu0 0.0
    %2041 = vmatpush1.msra.mxu0 0.0
    %2042 = vmatprep.subr.mxu0 0.0
    %2043 = vmatpush1.msra.mxu0 0.0
    %2044 = vmatprep.subr.mxu0 0.0
    %2045 = vmatpush1.msra.mxu0 0.0
    %2046 = vmatprep.subr.mxu0 0.0
    %2047 = vmatpush1.msra.mxu0 0.0
    %2048 = vmatprep.subr.mxu0 0.0
    %2049 = vmatpush1.msra.mxu0 0.0
    %2050 = vmatprep.subr.mxu0 0.0
    %2051 = vmatpush1.msra.mxu0 0.0
    %2052 = vmatprep.subr.mxu0 0.0
    %2053 = vmatpush1.msra.mxu0 0.0
    %2054 = vmatprep.subr.mxu0 0.0
    %2055 = vmatpush1.msra.mxu0 0.0
    %2056 = vmatprep.subr.mxu0 0.0
    %2057 = vmatpush1.msra.mxu0 0.0
    %2058 = vmatprep.subr.mxu0 0.0
    %2059 = vmatpush1.msra.mxu0 0.0
    %2060 = vmatprep.subr.mxu0 0.0
    %2061 = vmatpush1.msra.mxu0 0.0
    %2062 = vmatprep.subr.mxu0 0.0
    %2063 = vmatpush1.msra.mxu0 0.0
    %2064 = vmatprep.subr.mxu0 0.0
    %2065 = vmatpush1.msra.mxu0 0.0
    %2066 = vmatprep.subr.mxu0 0.0
    %2067 = vmatpush1.msra.mxu0 0.0
    %2068 = vmatprep.subr.mxu0 0.0
    %2069 = vmatpush1.msra.mxu0 0.0
    %2070 = vmatprep.subr.mxu0 0.0
    %2071 = vmatpush1.msra.mxu0 0.0
    %2072 = vmatprep.subr.mxu0 0.0
    %2073 = vmatpush1.msra.mxu0 0.0
    %2074 = vmatprep.mubr.f32.mxu0 0.0
    %2075 = vmatmul.mubr.f32.gmra.mrb[0].mxu0 %v2008
    %v2076 = vpop.f32.mrb[0].mxu0
    %v2077 = vadd.f32 0.0, %v2076
    %v2078 = vpop.f32.mrb[0].mxu0
    %2079 = vdwg.mxu0
    %vm2080 = vcmask 517120
    %2081 = vst.msk [vmem:[#allocation5] sm:$0x3] %vm2080, %v2077
    // Predicated region
    $region14: #{_lambda_.1} parent=1 // pred_check
      _
    $region15: #{_lambda_.1} parent=1 // pred_check_branch
      %2083 = sbr.rel (0) target = $region17
    $region16: #{_lambda_.1} parent=1 // pred_region
      %s2085 = ssub.s32 32, 32
      %2086 = vsyncadd [#allocation4], %s2085
      %s2088 = sshll.u32 [#allocation5], 4
      %s2089 = int_to_ptr.vmem [resolvable:$true] %s2088
      %2091 = dma.vmem_to_hbm [thread:$0]  %s2089, 32, %s2, [#allocation4]
    $region17: #{_lambda_.1} parent=1 // pred_fallthru
      _
    // Predicated region
    $region18: #{_lambda_.1} parent=1 // pred_check
      _
    $region19: #{_lambda_.1} parent=1 // pred_check_branch
      %2093 = sbr.rel (0) target = $region21
    $region20: #{_lambda_.1} parent=1 // pred_region
      %s2095 = ssub.s32 32, 32
      %2096 = vsyncadd [#allocation7], %s2095
      %s2098 = sshll.u32 [#allocation6], 4
      %s2099 = int_to_ptr.vmem [resolvable:$true] %s2098
      %2101 = dma.vmem_to_hbm [thread:$0]  %s2099, 32, %s3, [#allocation7]
    $region21: #{_lambda_.1} parent=1 // pred_fallthru
      _
    // Predicated region
    $region22: #{_lambda_.1} parent=1 // pred_check
      _
    $region23: #{_lambda_.1} parent=1 // pred_check_branch
      %2103 = sbr.rel (0) target = $region25
    $region24: #{_lambda_.1} parent=1 // pred_region
      %2104 = dma.done [#allocation4], 32
    $region25: #{_lambda_.1} parent=1 // pred_fallthru
      _
    // Predicated region
    $region26: #{_lambda_.1} parent=1 // pred_check
      _
    $region27: #{_lambda_.1} parent=1 // pred_check_branch
      %2106 = sbr.rel (0) target = $region29
    $region28: #{_lambda_.1} parent=1 // pred_region
      %2107 = dma.done [#allocation7], 32
    $region29: #{_lambda_.1} parent=1 // pred_fallthru
      _
    %2108 = vsyncpa [#allocation3], 1
    %2109 = vsyncpa [#allocation4], 1
    %2110 = vsyncpa [#allocation7], 1

</llo_original>
